<compile_context>
chip_gen: v5e
topology: v5e:2x2
jax: 0.10.0
libtpu: 0.0.40
codegen_flags: <defaults>
</compile_context>

<pallas_src>
import functools

import jax
import jax.numpy as jnp
from jax import lax
from jax.experimental import pallas as pl
from jax.experimental.pallas import tpu as pltpu


def _basic_block_kernel(x_ref, halo_ref, w1_ref, b1_ref, w2_ref, b2_ref,
                        out_ref, xpad_s, mid_s, *, th, w, wp, h_valid):
    """relu(bn2(conv2(relu(bn1(conv1(x))))) + x) for one (batch, row-tile) step.

    x_ref    : (1, th, wp, Cin)   bf16  main input tile (W already zero-padded)
    halo_ref : (1, 4, wp, Cin)    bf16  rows [r0-2, r0-1, r0+th, r0+th+1]
    w1_ref   : (3, 3*Cin, Cout)   bf16  conv1 weights, BN1 scale folded, kw-merged
    b1_ref   : (1, Cout)          f32   folded BN1 shift
    w2_ref   : (3, 3*Cout, Cout)  bf16  conv2 weights, BN2 scale folded, kw-merged
    b2_ref   : (1, Cout)          f32   folded BN2 shift
    out_ref  : (1, th, w, Cout)   bf16
    xpad_s   : (th+4, wp, Cin)    bf16  VMEM scratch: 2-row-halo padded input
    mid_s    : (th+2, wp, Cout)   bf16  VMEM scratch: conv1 output (+1-row halo)
    """
    cin = x_ref.shape[3]
    cout = out_ref.shape[3]

    # ---- assemble the 2-row-halo padded input tile in VMEM -----------------
    # The W zero border and out-of-image halo rows are already zero in the HBM
    # layout, so this is pure data movement: no zero fills at all.
    xpad_s[0:2] = halo_ref[0, 0:2]
    xpad_s[2:th + 2] = x_ref[0]
    xpad_s[th + 2:th + 4] = halo_ref[0, 2:4]

    def conv3x3(src_ref, rows, wk_ref, k3):
        # Merged-kw im2col: 3 dot_generals with K = 3*C instead of 9 with K=C.
        acc = None
        for kh in range(3):                               # statically unrolled
            patch = jnp.concatenate(
                [src_ref[kh:kh + rows, c0:c0 + w, :] for c0 in range(3)],
                axis=-1)                                   # (rows, w, 3*C) bf16
            part = jnp.dot(patch.reshape(rows * w, k3), wk_ref[kh],
                           preferred_element_type=jnp.float32)
            acc = part if acc is None else acc + part
        return acc                                         # (rows*w, Cout) f32

    # ---- conv1 + folded bn1 + relu over th+2 rows (1-row halo for conv2) ---
    mid = jnp.maximum(conv3x3(xpad_s, th + 2, w1_ref, 3 * cin) + b1_ref[...], 0.0)
    mid = mid.reshape(th + 2, w, cout)
    # conv2 zero-pads the *conv1 output* in H, so mid rows outside the image
    # must be exactly zero (not conv1-of-zero-input).  Mask by global row.
    g = (pl.program_id(1) * th - 1
         + lax.broadcasted_iota(jnp.int32, (th + 2, 1, 1), 0))
    mid = jnp.where((g >= 0) & (g < h_valid), mid, 0.0)
    # mid_s W border columns implement conv2's W zero padding; rewrite them
    # every step (2 tiny columns) so there is no cross-step scratch state and
    # both grid axes stay safely "parallel".
    mid_s[:, 0:1, :] = jnp.zeros((th + 2, 1, cout), mid_s.dtype)
    mid_s[:, wp - 1:wp, :] = jnp.zeros((th + 2, 1, cout), mid_s.dtype)
    mid_s[:, 1:w + 1, :] = mid.astype(mid_s.dtype)

    # ---- conv2 + folded bn2 + residual + relu over the th output rows ------
    res = x_ref[0, :, 1:w + 1, :].astype(jnp.float32).reshape(th * w, cout)
    y = conv3x3(mid_s, th, w2_ref, 3 * cout) + b2_ref[...] + res
    out_ref[0] = jnp.maximum(y, 0.0).reshape(th, w, cout).astype(out_ref.dtype)


def _fold_conv_bn(conv_w_oihw, gamma, beta, mean, var, eps):
    """Fold eval-mode BN into the conv.

    Returns merged-kw bf16 weights of shape (3, 3*Cin, Cout) (kw-major within
    the contraction dim, matching the kernel's im2col layout) and an f32
    (1, Cout) bias.
    """
    scale = gamma / jnp.sqrt(var + eps)                    # (Cout,)
    bias = beta - mean * scale                             # (Cout,)
    cout, cin = conv_w_oihw.shape[0], conv_w_oihw.shape[1]
    wk = jnp.transpose(conv_w_oihw, (2, 3, 1, 0))          # (kh, kw, cin, cout)
    wk = wk * scale[None, None, None, :]
    wk = wk.reshape(3, 3 * cin, cout)
    return wk.astype(jnp.bfloat16), bias.reshape(1, cout).astype(jnp.float32)


def _vmem_estimate(th, w, wp, cin, cout):
    """Per-step working set: double-buffered blocks + weights (x2 buffers) +
    scratch + f32 accumulators / im2col temporaries."""
    bf16, f32 = 2, 4
    x_blk = th * wp * cin * bf16
    halo_blk = 4 * wp * cin * bf16
    out_blk = th * w * cout * bf16
    weights = (9 * cin * cout + 9 * cout * cout) * bf16 + 2 * cout * f32
    scratch = (th + 4) * wp * cin * bf16 + (th + 2) * wp * cout * bf16
    tmps = ((th + 2) * w * (3 * cin * bf16 + cout * f32)        # conv1 patch + acc
            + th * w * (3 * cout * bf16 + 2 * cout * f32))      # conv2 patch + acc + res
    return 2 * (x_blk + halo_blk + out_blk) + 2 * weights + scratch + tmps


def _vmem_limit_bytes(th, w, wp, cin, cout):
    est = _vmem_estimate(th, w, wp, cin, cout) + (4 << 20)
    return int(min(max(est, 16 << 20), 96 << 20))


def _choose_row_tile(h, w, wp, cin, cout, budget):
    # Largest tile whose estimated working set fits the budget (don't let tiny
    # self-test channel counts drive tiling at production shapes).
    for th in (128, 96, 64, 48, 32, 24, 16, 12, 8, 4, 2, 1):
        th = min(th, h)
        if _vmem_estimate(th, w, wp, cin, cout) + (4 << 20) <= budget:
            return th
    return 1


def basic_block_forward(x_nchw, params, *, eps=1e-5, row_tile=None,
                        vmem_budget_bytes=40 << 20, out_dtype=jnp.bfloat16):
    """BasicBlock.forward (stride=1, dilation=1, downsample=None), frozen BN."""
    # TODO(synk): stride>1 / dilation>1 / downsample branch and training-mode
    # BatchNorm (batch statistics) are not implemented; eval/frozen semantics
    # of the default BasicBlock config only.
    n, c, h, w = x_nchw.shape
    cout = params["conv1_w"].shape[0]
    if c != cout:
        raise NotImplementedError("identity residual requires inplanes == planes")

    w1, b1 = _fold_conv_bn(params["conv1_w"], params["bn1_gamma"],
                           params["bn1_beta"], params["bn1_mean"],
                           params["bn1_var"], eps)
    w2, b2 = _fold_conv_bn(params["conv2_w"], params["bn2_gamma"],
                           params["bn2_beta"], params["bn2_mean"],
                           params["bn2_var"], eps)

    wp = w + 2
    th = row_tile if row_tile is not None else _choose_row_tile(
        h, w, wp, c, cout, vmem_budget_bytes)
    nt = -(-h // th)                                   # ceil(h / th)
    pad_h = nt * th - h

    # NCHW -> NHWC, bf16 MXU operands, 1-column zero W border baked into HBM.
    x = jnp.pad(jnp.transpose(x_nchw, (0, 2, 3, 1)).astype(jnp.bfloat16),
                ((0, 0), (0, 0), (1, 1), (0, 0)))            # (n, h, wp, c)
    x_main = jnp.pad(x, ((0, 0), (0, pad_h), (0, 0), (0, 0)))  # (n, nt*th, wp, c)

    # Per-tile 4-row halo slabs (rows r0-2, r0-1, r0+th, r0+th+1; zeros outside
    # the image), built once here so the kernel never fetches overlapping HBM
    # windows and never zero-fills.
    xp = jnp.pad(x, ((0, 0), (2, pad_h + 2), (0, 0), (0, 0)))
    halo = jnp.stack(
        [jnp.concatenate([xp[:, i * th:i * th + 2],
                          xp[:, (i + 1) * th + 2:(i + 1) * th + 4]], axis=1)
         for i in range(nt)], axis=1).reshape(n * nt, 4, wp, c)

    kernel = functools.partial(_basic_block_kernel, th=th, w=w, wp=wp, h_valid=h)
    out = pl.pallas_call(
        kernel,
        out_shape=jax.ShapeDtypeStruct((n, nt * th, w, cout), jnp.bfloat16),
        grid_spec=pltpu.PrefetchScalarGridSpec(
            num_scalar_prefetch=0,
            grid=(n, nt),
            in_specs=[
                pl.BlockSpec((1, th, wp, c), lambda b, i: (b, i, 0, 0)),
                pl.BlockSpec((1, 4, wp, c), lambda b, i: (b * nt + i, 0, 0, 0)),
                pl.BlockSpec((3, 3 * c, cout), lambda b, i: (0, 0, 0)),
                pl.BlockSpec((1, cout), lambda b, i: (0, 0)),
                pl.BlockSpec((3, 3 * cout, cout), lambda b, i: (0, 0, 0)),
                pl.BlockSpec((1, cout), lambda b, i: (0, 0)),
            ],
            out_specs=pl.BlockSpec((1, th, w, cout), lambda b, i: (b, i, 0, 0)),
            scratch_shapes=[
                pltpu.VMEM((th + 4, wp, c), jnp.bfloat16),      # padded input tile
                pltpu.VMEM((th + 2, wp, cout), jnp.bfloat16),   # conv1 output tile
            ],
        ),
        compiler_params=pltpu.CompilerParams(
            dimension_semantics=("parallel", "parallel"),
            vmem_limit_bytes=_vmem_limit_bytes(th, w, wp, c, cout),
        ),
    )(x_main, halo, w1, b1, w2, b2)

    out = jnp.transpose(out[:, :h], (0, 3, 1, 2))               # NHWC -> NCHW
    return out.astype(out_dtype)


# --------------------------- reference & self-test ---------------------------


def _conv3x3_ref(x_nhwc, w_merged_bf16):
    """Plain-JAX 3x3 'same' conv with the same per-tap math (f32 accumulation)."""
    n, h, w, cin = x_nhwc.shape
    cout = w_merged_bf16.shape[-1]
    wk = w_merged_bf16.astype(jnp.float32).reshape(3, 3, cin, cout)
    xpad = jnp.pad(x_nhwc, ((0, 0), (1, 1), (1, 1), (0, 0)))
    out = jnp.zeros((n, h, w, cout), jnp.float32)
    for kh in range(3):
        for kw in range(3):
            out = out + jnp.einsum("nhwc,co->nhwo",
                                   xpad[:, kh:kh + h, kw:kw + w, :], wk[kh, kw],
                                   precision=lax.Precision.HIGHEST)
    return out


def _reference_forward(x_nchw, params, eps=1e-5):
    """Pure-JAX reference with the same folded-BN / bf16-operand rounding."""
    x = jnp.transpose(x_nchw, (0, 2, 3, 1)).astype(jnp.float32)
    xq = x.astype(jnp.bfloat16).astype(jnp.float32)        # same operand rounding
    w1, b1 = _fold_conv_bn(params["conv1_w"], params["bn1_gamma"],
                           params["bn1_beta"], params["bn1_mean"],
                           params["bn1_var"], eps)
    w2, b2 = _fold_conv_bn(params["conv2_w"], params["bn2_gamma"],
                           params["bn2_beta"], params["bn2_mean"],
                           params["bn2_var"], eps)
    mid = jnp.maximum(_conv3x3_ref(xq, w1) + b1, 0.0)
    midq = mid.astype(jnp.bfloat16).astype(jnp.float32)    # kernel keeps mid in bf16
    out = jnp.maximum(_conv3x3_ref(midq, w2) + b2 + xq, 0.0)
    return jnp.transpose(out, (0, 3, 1, 2))


def make_params(key, inplanes, planes):
    ks = jax.random.split(key, 8)
    return {
        "conv1_w": 0.1 * jax.random.normal(ks[0], (planes, inplanes, 3, 3), jnp.float32),
        "conv2_w": 0.1 * jax.random.normal(ks[1], (planes, planes, 3, 3), jnp.float32),
        "bn1_gamma": 1.0 + 0.1 * jax.random.normal(ks[2], (planes,), jnp.float32),
        "bn1_beta": 0.1 * jax.random.normal(ks[3], (planes,), jnp.float32),
        "bn1_mean": 0.1 * jax.random.normal(ks[4], (planes,), jnp.float32),
        "bn1_var": jnp.abs(jax.random.normal(ks[5], (planes,), jnp.float32)) + 1.0,
        "bn2_gamma": 1.0 + 0.1 * jax.random.normal(ks[6], (planes,), jnp.float32),
        "bn2_beta": 0.1 * jax.random.normal(ks[7], (planes,), jnp.float32),
        "bn2_mean": jnp.zeros((planes,), jnp.float32),
        "bn2_var": jnp.ones((planes,), jnp.float32),
    }


if __name__ == "__main__":
    key = jax.random.PRNGKey(0)
    kx, kp = jax.random.split(key)

    N, C, H, W = 2, 4, 16, 16          # inplanes == planes, stride=1, no downsample
    x = jax.random.normal(kx, (N, C, H, W), jnp.float32)
    params = make_params(kp, inplanes=C, planes=C)

    ref = jax.block_until_ready(_reference_forward(x, params))

    # row_tile=4: interior tiles with real halo rows on both sides.
    # row_tile=6: H not divisible by the tile -> padded-last-tile path.
    # row_tile=None: auto tile choice (whole image at this size).
    for rt in (4, 6, None):
        out = jax.block_until_ready(basic_block_forward(x, params, row_tile=rt))
        assert out.shape == (N, C, H, W), out.shape
        err = float(jnp.max(jnp.abs(out.astype(jnp.float32) - ref)))
        assert err < 5e-2, f"row_tile={rt}: max|diff| vs reference = {err}"

    print("KERNEL_OK")
</pallas_src>

<mosaic_0001>
module attributes {stable_mosaic.version = 11 : i64} {
  func.func @_basic_block_kernel(%arg0: i32, %arg1: i32, %arg2: memref<1x4x18x4xbf16, #tpu.memory_space<vmem>>, %arg3: memref<1x4x18x4xbf16, #tpu.memory_space<vmem>>, %arg4: memref<3x12x4xbf16, #tpu.memory_space<vmem>>, %arg5: memref<1x4xf32, #tpu.memory_space<vmem>>, %arg6: memref<3x12x4xbf16, #tpu.memory_space<vmem>>, %arg7: memref<1x4xf32, #tpu.memory_space<vmem>>, %arg8: memref<1x4x16x4xbf16, #tpu.memory_space<vmem>>, %arg9: memref<8x18x4xbf16, #tpu.memory_space<vmem>>, %arg10: memref<6x18x4xbf16, #tpu.memory_space<vmem>>) attributes {dimension_semantics = [#tpu.dimension_semantics<parallel>, #tpu.dimension_semantics<parallel>], iteration_bounds = array<i64: 2, 4>, scalar_prefetch = 0 : i64, scratch_operands = 2 : i64, tpu.core_type = #tpu.core_type<tc>, window_params = [{transform_indices = @transform_0, window_bounds = array<i64: 1, 4, 18, 4>}, {transform_indices = @transform_1, window_bounds = array<i64: 1, 4, 18, 4>}, {pipeline_mode = #tpu.pipeline_mode<synchronous>, transform_indices = @transform_2, window_bounds = array<i64: 3, 12, 4>}, {pipeline_mode = #tpu.pipeline_mode<synchronous>, transform_indices = @transform_3, window_bounds = array<i64: 1, 4>}, {pipeline_mode = #tpu.pipeline_mode<synchronous>, transform_indices = @transform_4, window_bounds = array<i64: 3, 12, 4>}, {pipeline_mode = #tpu.pipeline_mode<synchronous>, transform_indices = @transform_5, window_bounds = array<i64: 1, 4>}, {transform_indices = @transform_6, window_bounds = array<i64: 1, 4, 16, 4>}]} {
    %c0 = arith.constant 0 : index
    %c0_0 = arith.constant 0 : index
    %c0_1 = arith.constant 0 : index
    %c0_2 = arith.constant 0 : index
    %0 = vector.load %arg3[%c0, %c0_0, %c0_1, %c0_2] : memref<1x4x18x4xbf16, #tpu.memory_space<vmem>>, vector<1x2x18x4xbf16>
    %1 = vector.shape_cast %0 : vector<1x2x18x4xbf16> to vector<2x18x4xbf16>
    %c0_3 = arith.constant 0 : index
    %c0_4 = arith.constant 0 : index
    %c0_5 = arith.constant 0 : index
    %2 = vector.load %arg9[%c0_3, %c0_4, %c0_5] : memref<8x18x4xbf16, #tpu.memory_space<vmem>>, vector<2x18x4xbf16>
    tpu.vector_store %arg9[%c0_3, %c0_4, %c0_5], %1 {strides = array<i32>} : memref<8x18x4xbf16, #tpu.memory_space<vmem>>, vector<2x18x4xbf16>,
    %c0_6 = arith.constant 0 : index
    %c0_7 = arith.constant 0 : index
    %c0_8 = arith.constant 0 : index
    %c0_9 = arith.constant 0 : index
    %3 = vector.load %arg2[%c0_6, %c0_7, %c0_8, %c0_9] : memref<1x4x18x4xbf16, #tpu.memory_space<vmem>>, vector<1x4x18x4xbf16>
    %4 = vector.shape_cast %3 : vector<1x4x18x4xbf16> to vector<4x18x4xbf16>
    %c2 = arith.constant 2 : index
    %c0_10 = arith.constant 0 : index
    %c0_11 = arith.constant 0 : index
    %5 = vector.load %arg9[%c2, %c0_10, %c0_11] : memref<8x18x4xbf16, #tpu.memory_space<vmem>>, vector<4x18x4xbf16>
    tpu.vector_store %arg9[%c2, %c0_10, %c0_11], %4 {strides = array<i32>} : memref<8x18x4xbf16, #tpu.memory_space<vmem>>, vector<4x18x4xbf16>,
    %c0_12 = arith.constant 0 : index
    %c2_13 = arith.constant 2 : index
    %c0_14 = arith.constant 0 : index
    %c0_15 = arith.constant 0 : index
    %6 = vector.load %arg3[%c0_12, %c2_13, %c0_14, %c0_15] : memref<1x4x18x4xbf16, #tpu.memory_space<vmem>>, vector<1x2x18x4xbf16>
    %7 = vector.shape_cast %6 : vector<1x2x18x4xbf16> to vector<2x18x4xbf16>
    %c6 = arith.constant 6 : index
    %c0_16 = arith.constant 0 : index
    %c0_17 = arith.constant 0 : index
    %8 = vector.load %arg9[%c6, %c0_16, %c0_17] : memref<8x18x4xbf16, #tpu.memory_space<vmem>>, vector<2x18x4xbf16>
    tpu.vector_store %arg9[%c6, %c0_16, %c0_17], %7 {strides = array<i32>} : memref<8x18x4xbf16, #tpu.memory_space<vmem>>, vector<2x18x4xbf16>,
    %c0_18 = arith.constant 0 : index
    %c0_19 = arith.constant 0 : index
    %c0_20 = arith.constant 0 : index
    %9 = vector.load %arg9[%c0_18, %c0_19, %c0_20] : memref<8x18x4xbf16, #tpu.memory_space<vmem>>, vector<6x16x4xbf16>
    %c0_21 = arith.constant 0 : index
    %c1 = arith.constant 1 : index
    %c0_22 = arith.constant 0 : index
    %10 = vector.load %arg9[%c0_21, %c1, %c0_22] : memref<8x18x4xbf16, #tpu.memory_space<vmem>>, vector<6x16x4xbf16>
    %c0_23 = arith.constant 0 : index
    %c2_24 = arith.constant 2 : index
    %c0_25 = arith.constant 0 : index
    %11 = vector.load %arg9[%c0_23, %c2_24, %c0_25] : memref<8x18x4xbf16, #tpu.memory_space<vmem>>, vector<6x16x4xbf16>
    %12 = tpu.concatenate %9, %10, %11 in 2 : vector<6x16x4xbf16>, vector<6x16x4xbf16>, vector<6x16x4xbf16> -> vector<6x16x12xbf16>
    %13 = vector.shape_cast %12 : vector<6x16x12xbf16> to vector<96x12xbf16>
    %c0_26 = arith.constant 0 : index
    %c0_27 = arith.constant 0 : index
    %c0_28 = arith.constant 0 : index
    %14 = vector.load %arg4[%c0_26, %c0_27, %c0_28] : memref<3x12x4xbf16, #tpu.memory_space<vmem>>, vector<1x12x4xbf16>
    %15 = vector.shape_cast %14 : vector<1x12x4xbf16> to vector<12x4xbf16>
    %cst = arith.constant dense<0.000000e+00> : vector<96x4xf32>
    %16 = tpu.matmul %13, %15, %cst {dimension_numbers = #tpu.dot_dimension_numbers<[1], [0], [0], [1], [0, 0, 1, 1], [], []>} : vector<96x12xbf16>, vector<12x4xbf16>, vector<96x4xf32> -> vector<96x4xf32>
    %c1_29 = arith.constant 1 : index
    %c0_30 = arith.constant 0 : index
    %c0_31 = arith.constant 0 : index
    %17 = vector.load %arg9[%c1_29, %c0_30, %c0_31] : memref<8x18x4xbf16, #tpu.memory_space<vmem>>, vector<6x16x4xbf16>
    %c1_32 = arith.constant 1 : index
    %c1_33 = arith.constant 1 : index
    %c0_34 = arith.constant 0 : index
    %18 = vector.load %arg9[%c1_32, %c1_33, %c0_34] : memref<8x18x4xbf16, #tpu.memory_space<vmem>>, vector<6x16x4xbf16>
    %c1_35 = arith.constant 1 : index
    %c2_36 = arith.constant 2 : index
    %c0_37 = arith.constant 0 : index
    %19 = vector.load %arg9[%c1_35, %c2_36, %c0_37] : memref<8x18x4xbf16, #tpu.memory_space<vmem>>, vector<6x16x4xbf16>
    %20 = tpu.concatenate %17, %18, %19 in 2 : vector<6x16x4xbf16>, vector<6x16x4xbf16>, vector<6x16x4xbf16> -> vector<6x16x12xbf16>
    %21 = vector.shape_cast %20 : vector<6x16x12xbf16> to vector<96x12xbf16>
    %c1_38 = arith.constant 1 : index
    %c0_39 = arith.constant 0 : index
    %c0_40 = arith.constant 0 : index
    %22 = vector.load %arg4[%c1_38, %c0_39, %c0_40] : memref<3x12x4xbf16, #tpu.memory_space<vmem>>, vector<1x12x4xbf16>
    %23 = vector.shape_cast %22 : vector<1x12x4xbf16> to vector<12x4xbf16>
    %cst_41 = arith.constant dense<0.000000e+00> : vector<96x4xf32>
    %24 = tpu.matmul %21, %23, %cst_41 {dimension_numbers = #tpu.dot_dimension_numbers<[1], [0], [0], [1], [0, 0, 1, 1], [], []>} : vector<96x12xbf16>, vector<12x4xbf16>, vector<96x4xf32> -> vector<96x4xf32>
    %25 = arith.addf %16, %24 : vector<96x4xf32>
    %c2_42 = arith.constant 2 : index
    %c0_43 = arith.constant 0 : index
    %c0_44 = arith.constant 0 : index
    %26 = vector.load %arg9[%c2_42, %c0_43, %c0_44] : memref<8x18x4xbf16, #tpu.memory_space<vmem>>, vector<6x16x4xbf16>
    %c2_45 = arith.constant 2 : index
    %c1_46 = arith.constant 1 : index
    %c0_47 = arith.constant 0 : index
    %27 = vector.load %arg9[%c2_45, %c1_46, %c0_47] : memref<8x18x4xbf16, #tpu.memory_space<vmem>>, vector<6x16x4xbf16>
    %c2_48 = arith.constant 2 : index
    %c2_49 = arith.constant 2 : index
    %c0_50 = arith.constant 0 : index
    %28 = vector.load %arg9[%c2_48, %c2_49, %c0_50] : memref<8x18x4xbf16, #tpu.memory_space<vmem>>, vector<6x16x4xbf16>
    %29 = tpu.concatenate %26, %27, %28 in 2 : vector<6x16x4xbf16>, vector<6x16x4xbf16>, vector<6x16x4xbf16> -> vector<6x16x12xbf16>
    %30 = vector.shape_cast %29 : vector<6x16x12xbf16> to vector<96x12xbf16>
    %c2_51 = arith.constant 2 : index
    %c0_52 = arith.constant 0 : index
    %c0_53 = arith.constant 0 : index
    %31 = vector.load %arg4[%c2_51, %c0_52, %c0_53] : memref<3x12x4xbf16, #tpu.memory_space<vmem>>, vector<1x12x4xbf16>
    %32 = vector.shape_cast %31 : vector<1x12x4xbf16> to vector<12x4xbf16>
    %cst_54 = arith.constant dense<0.000000e+00> : vector<96x4xf32>
    %33 = tpu.matmul %30, %32, %cst_54 {dimension_numbers = #tpu.dot_dimension_numbers<[1], [0], [0], [1], [0, 0, 1, 1], [], []>} : vector<96x12xbf16>, vector<12x4xbf16>, vector<96x4xf32> -> vector<96x4xf32>
    %34 = arith.addf %25, %33 : vector<96x4xf32>
    %c0_55 = arith.constant 0 : index
    %c0_56 = arith.constant 0 : index
    %35 = vector.load %arg5[%c0_55, %c0_56] : memref<1x4xf32, #tpu.memory_space<vmem>>, vector<1x4xf32>
    %36 = vector.broadcast %35 : vector<1x4xf32> to vector<96x4xf32>
    %37 = arith.addf %34, %36 : vector<96x4xf32>
    %cst_57 = arith.constant 0.000000e+00 : f32
    %38 = vector.broadcast %cst_57 : f32 to vector<96x4xf32>
    %39 = arith.maximumf %37, %38 : vector<96x4xf32>
    %40 = vector.shape_cast %39 : vector<96x4xf32> to vector<6x16x4xf32>
    %c4_i32 = arith.constant 4 : i32
    %41 = arith.muli %arg1, %c4_i32 : i32
    %c1_i32 = arith.constant 1 : i32
    %42 = arith.subi %41, %c1_i32 : i32
    %43 = tpu.iota {dimensions = array<i32: 0>} : vector<6x1x1xi32>
    %44 = vector.broadcast %42 : i32 to vector<6x1x1xi32>
    %45 = arith.addi %44, %43 : vector<6x1x1xi32>
    %c0_i32 = arith.constant 0 : i32
    %46 = vector.broadcast %c0_i32 : i32 to vector<6x1x1xi32>
    %47 = arith.cmpi sge, %45, %46 : vector<6x1x1xi32>
    %c16_i32 = arith.constant 16 : i32
    %48 = vector.broadcast %c16_i32 : i32 to vector<6x1x1xi32>
    %49 = arith.cmpi slt, %45, %48 : vector<6x1x1xi32>
    %50 = arith.andi %47, %49 : vector<6x1x1xi1>
    %cst_58 = arith.constant 0.000000e+00 : f32
    %51 = vector.shape_cast %50 : vector<6x1x1xi1> to vector<6x1x1xi1>
    %52 = vector.broadcast %51 : vector<6x1x1xi1> to vector<6x16x4xi1>
    %53 = vector.broadcast %cst_58 : f32 to vector<6x16x4xf32>
    %54 = arith.select %52, %40, %53 : vector<6x16x4xi1>, vector<6x16x4xf32>
    %cst_59 = arith.constant 0.000000e+00 : bf16
    %55 = vector.broadcast %cst_59 : bf16 to vector<6x1x4xbf16>
    %c0_60 = arith.constant 0 : index
    %c0_61 = arith.constant 0 : index
    %c0_62 = arith.constant 0 : index
    %56 = vector.load %arg10[%c0_60, %c0_61, %c0_62] : memref<6x18x4xbf16, #tpu.memory_space<vmem>>, vector<6x1x4xbf16>
    tpu.vector_store %arg10[%c0_60, %c0_61, %c0_62], %55 {strides = array<i32>} : memref<6x18x4xbf16, #tpu.memory_space<vmem>>, vector<6x1x4xbf16>,
    %cst_63 = arith.constant 0.000000e+00 : bf16
    %57 = vector.broadcast %cst_63 : bf16 to vector<6x1x4xbf16>
    %c0_64 = arith.constant 0 : index
    %c17 = arith.constant 17 : index
    %c0_65 = arith.constant 0 : index
    %58 = vector.load %arg10[%c0_64, %c17, %c0_65] : memref<6x18x4xbf16, #tpu.memory_space<vmem>>, vector<6x1x4xbf16>
    tpu.vector_store %arg10[%c0_64, %c17, %c0_65], %57 {strides = array<i32>} : memref<6x18x4xbf16, #tpu.memory_space<vmem>>, vector<6x1x4xbf16>,
    %59 = arith.truncf %54 : vector<6x16x4xf32> to vector<6x16x4xbf16>
    %c0_66 = arith.constant 0 : index
    %c1_67 = arith.constant 1 : index
    %c0_68 = arith.constant 0 : index
    %60 = vector.load %arg10[%c0_66, %c1_67, %c0_68] : memref<6x18x4xbf16, #tpu.memory_space<vmem>>, vector<6x16x4xbf16>
    tpu.vector_store %arg10[%c0_66, %c1_67, %c0_68], %59 {strides = array<i32>} : memref<6x18x4xbf16, #tpu.memory_space<vmem>>, vector<6x16x4xbf16>,
    %c0_69 = arith.constant 0 : index
    %c0_70 = arith.constant 0 : index
    %c1_71 = arith.constant 1 : index
    %c0_72 = arith.constant 0 : index
    %61 = vector.load %arg2[%c0_69, %c0_70, %c1_71, %c0_72] : memref<1x4x18x4xbf16, #tpu.memory_space<vmem>>, vector<1x4x16x4xbf16>
    %62 = vector.shape_cast %61 : vector<1x4x16x4xbf16> to vector<4x16x4xbf16>
    %63 = arith.extf %62 : vector<4x16x4xbf16> to vector<4x16x4xf32>
    %64 = vector.shape_cast %63 : vector<4x16x4xf32> to vector<64x4xf32>
    %c0_73 = arith.constant 0 : index
    %c0_74 = arith.constant 0 : index
    %c0_75 = arith.constant 0 : index
    %65 = vector.load %arg10[%c0_73, %c0_74, %c0_75] : memref<6x18x4xbf16, #tpu.memory_space<vmem>>, vector<4x16x4xbf16>
    %c0_76 = arith.constant 0 : index
    %c1_77 = arith.constant 1 : index
    %c0_78 = arith.constant 0 : index
    %66 = vector.load %arg10[%c0_76, %c1_77, %c0_78] : memref<6x18x4xbf16, #tpu.memory_space<vmem>>, vector<4x16x4xbf16>
    %c0_79 = arith.constant 0 : index
    %c2_80 = arith.constant 2 : index
    %c0_81 = arith.constant 0 : index
    %67 = vector.load %arg10[%c0_79, %c2_80, %c0_81] : memref<6x18x4xbf16, #tpu.memory_space<vmem>>, vector<4x16x4xbf16>
    %68 = tpu.concatenate %65, %66, %67 in 2 : vector<4x16x4xbf16>, vector<4x16x4xbf16>, vector<4x16x4xbf16> -> vector<4x16x12xbf16>
    %69 = vector.shape_cast %68 : vector<4x16x12xbf16> to vector<64x12xbf16>
    %c0_82 = arith.constant 0 : index
    %c0_83 = arith.constant 0 : index
    %c0_84 = arith.constant 0 : index
    %70 = vector.load %arg6[%c0_82, %c0_83, %c0_84] : memref<3x12x4xbf16, #tpu.memory_space<vmem>>, vector<1x12x4xbf16>
    %71 = vector.shape_cast %70 : vector<1x12x4xbf16> to vector<12x4xbf16>
    %cst_85 = arith.constant dense<0.000000e+00> : vector<64x4xf32>
    %72 = tpu.matmul %69, %71, %cst_85 {dimension_numbers = #tpu.dot_dimension_numbers<[1], [0], [0], [1], [0, 0, 1, 1], [], []>} : vector<64x12xbf16>, vector<12x4xbf16>, vector<64x4xf32> -> vector<64x4xf32>
    %c1_86 = arith.constant 1 : index
    %c0_87 = arith.constant 0 : index
    %c0_88 = arith.constant 0 : index
    %73 = vector.load %arg10[%c1_86, %c0_87, %c0_88] : memref<6x18x4xbf16, #tpu.memory_space<vmem>>, vector<4x16x4xbf16>
    %c1_89 = arith.constant 1 : index
    %c1_90 = arith.constant 1 : index
    %c0_91 = arith.constant 0 : index
    %74 = vector.load %arg10[%c1_89, %c1_90, %c0_91] : memref<6x18x4xbf16, #tpu.memory_space<vmem>>, vector<4x16x4xbf16>
    %c1_92 = arith.constant 1 : index
    %c2_93 = arith.constant 2 : index
    %c0_94 = arith.constant 0 : index
    %75 = vector.load %arg10[%c1_92, %c2_93, %c0_94] : memref<6x18x4xbf16, #tpu.memory_space<vmem>>, vector<4x16x4xbf16>
    %76 = tpu.concatenate %73, %74, %75 in 2 : vector<4x16x4xbf16>, vector<4x16x4xbf16>, vector<4x16x4xbf16> -> vector<4x16x12xbf16>
    %77 = vector.shape_cast %76 : vector<4x16x12xbf16> to vector<64x12xbf16>
    %c1_95 = arith.constant 1 : index
    %c0_96 = arith.constant 0 : index
    %c0_97 = arith.constant 0 : index
    %78 = vector.load %arg6[%c1_95, %c0_96, %c0_97] : memref<3x12x4xbf16, #tpu.memory_space<vmem>>, vector<1x12x4xbf16>
    %79 = vector.shape_cast %78 : vector<1x12x4xbf16> to vector<12x4xbf16>
    %cst_98 = arith.constant dense<0.000000e+00> : vector<64x4xf32>
    %80 = tpu.matmul %77, %79, %cst_98 {dimension_numbers = #tpu.dot_dimension_numbers<[1], [0], [0], [1], [0, 0, 1, 1], [], []>} : vector<64x12xbf16>, vector<12x4xbf16>, vector<64x4xf32> -> vector<64x4xf32>
    %81 = arith.addf %72, %80 : vector<64x4xf32>
    %c2_99 = arith.constant 2 : index
    %c0_100 = arith.constant 0 : index
    %c0_101 = arith.constant 0 : index
    %82 = vector.load %arg10[%c2_99, %c0_100, %c0_101] : memref<6x18x4xbf16, #tpu.memory_space<vmem>>, vector<4x16x4xbf16>
    %c2_102 = arith.constant 2 : index
    %c1_103 = arith.constant 1 : index
    %c0_104 = arith.constant 0 : index
    %83 = vector.load %arg10[%c2_102, %c1_103, %c0_104] : memref<6x18x4xbf16, #tpu.memory_space<vmem>>, vector<4x16x4xbf16>
    %c2_105 = arith.constant 2 : index
    %c2_106 = arith.constant 2 : index
    %c0_107 = arith.constant 0 : index
    %84 = vector.load %arg10[%c2_105, %c2_106, %c0_107] : memref<6x18x4xbf16, #tpu.memory_space<vmem>>, vector<4x16x4xbf16>
    %85 = tpu.concatenate %82, %83, %84 in 2 : vector<4x16x4xbf16>, vector<4x16x4xbf16>, vector<4x16x4xbf16> -> vector<4x16x12xbf16>
    %86 = vector.shape_cast %85 : vector<4x16x12xbf16> to vector<64x12xbf16>
    %c2_108 = arith.constant 2 : index
    %c0_109 = arith.constant 0 : index
    %c0_110 = arith.constant 0 : index
    %87 = vector.load %arg6[%c2_108, %c0_109, %c0_110] : memref<3x12x4xbf16, #tpu.memory_space<vmem>>, vector<1x12x4xbf16>
    %88 = vector.shape_cast %87 : vector<1x12x4xbf16> to vector<12x4xbf16>
    %cst_111 = arith.constant dense<0.000000e+00> : vector<64x4xf32>
    %89 = tpu.matmul %86, %88, %cst_111 {dimension_numbers = #tpu.dot_dimension_numbers<[1], [0], [0], [1], [0, 0, 1, 1], [], []>} : vector<64x12xbf16>, vector<12x4xbf16>, vector<64x4xf32> -> vector<64x4xf32>
    %90 = arith.addf %81, %89 : vector<64x4xf32>
    %c0_112 = arith.constant 0 : index
    %c0_113 = arith.constant 0 : index
    %91 = vector.load %arg7[%c0_112, %c0_113] : memref<1x4xf32, #tpu.memory_space<vmem>>, vector<1x4xf32>
    %92 = vector.broadcast %91 : vector<1x4xf32> to vector<64x4xf32>
    %93 = arith.addf %90, %92 : vector<64x4xf32>
    %94 = arith.addf %93, %64 : vector<64x4xf32>
    %cst_114 = arith.constant 0.000000e+00 : f32
    %95 = vector.broadcast %cst_114 : f32 to vector<64x4xf32>
    %96 = arith.maximumf %94, %95 : vector<64x4xf32>
    %97 = vector.shape_cast %96 : vector<64x4xf32> to vector<4x16x4xf32>
    %98 = arith.truncf %97 : vector<4x16x4xf32> to vector<4x16x4xbf16>
    %c0_115 = arith.constant 0 : index
    %c0_116 = arith.constant 0 : index
    %c0_117 = arith.constant 0 : index
    %c0_118 = arith.constant 0 : index
    %99 = vector.load %arg8[%c0_115, %c0_116, %c0_117, %c0_118] : memref<1x4x16x4xbf16, #tpu.memory_space<vmem>>, vector<1x4x16x4xbf16>
    %100 = vector.shape_cast %99 : vector<1x4x16x4xbf16> to vector<4x16x4xbf16>
    %101 = vector.shape_cast %98 : vector<4x16x4xbf16> to vector<1x4x16x4xbf16>
    tpu.vector_store %arg8[%c0_115, %c0_116, %c0_117, %c0_118], %101 {strides = array<i32>} : memref<1x4x16x4xbf16, #tpu.memory_space<vmem>>, vector<1x4x16x4xbf16>,
    return
  }
  func.func @transform_0(%arg0: i32, %arg1: i32) -> (i32, i32, i32, i32) {
    %c0_i32 = arith.constant 0 : i32
    %c0_i32_0 = arith.constant 0 : i32
    %c0_i32_1 = arith.constant 0 : i32
    return %arg0, %arg1, %c0_i32, %c0_i32_0 : i32, i32, i32, i32
  }
  func.func @transform_1(%arg0: i32, %arg1: i32) -> (i32, i32, i32, i32) {
    %c4_i32 = arith.constant 4 : i32
    %0 = arith.muli %arg0, %c4_i32 : i32
    %1 = arith.addi %0, %arg1 : i32
    %c0_i32 = arith.constant 0 : i32
    %c0_i32_0 = arith.constant 0 : i32
    %c0_i32_1 = arith.constant 0 : i32
    %c0_i32_2 = arith.constant 0 : i32
    return %1, %c0_i32, %c0_i32_0, %c0_i32_1 : i32, i32, i32, i32
  }
  func.func @transform_2(%arg0: i32, %arg1: i32) -> (i32, i32, i32) {
    %c0_i32 = arith.constant 0 : i32
    %c0_i32_0 = arith.constant 0 : i32
    %c0_i32_1 = arith.constant 0 : i32
    %c0_i32_2 = arith.constant 0 : i32
    return %c0_i32, %c0_i32_0, %c0_i32_1 : i32, i32, i32
  }
  func.func @transform_3(%arg0: i32, %arg1: i32) -> (i32, i32) {
    %c0_i32 = arith.constant 0 : i32
    %c0_i32_0 = arith.constant 0 : i32
    %c0_i32_1 = arith.constant 0 : i32
    return %c0_i32, %c0_i32_0 : i32, i32
  }
  func.func @transform_4(%arg0: i32, %arg1: i32) -> (i32, i32, i32) {
    %c0_i32 = arith.constant 0 : i32
    %c0_i32_0 = arith.constant 0 : i32
    %c0_i32_1 = arith.constant 0 : i32
    %c0_i32_2 = arith.constant 0 : i32
    return %c0_i32, %c0_i32_0, %c0_i32_1 : i32, i32, i32
  }
  func.func @transform_5(%arg0: i32, %arg1: i32) -> (i32, i32) {
    %c0_i32 = arith.constant 0 : i32
    %c0_i32_0 = arith.constant 0 : i32
    %c0_i32_1 = arith.constant 0 : i32
    return %c0_i32, %c0_i32_0 : i32, i32
  }
  func.func @transform_6(%arg0: i32, %arg1: i32) -> (i32, i32, i32, i32) {
    %c0_i32 = arith.constant 0 : i32
    %c0_i32_0 = arith.constant 0 : i32
    %c0_i32_1 = arith.constant 0 : i32
    return %arg0, %arg1, %c0_i32, %c0_i32_0 : i32, i32, i32, i32
  }
}

</mosaic_0001>

<llo_original>
// kernel: tpu_custom_call.1
$region0: #{tpu_custom_call.1}
  #allocation0 [shape = 'u32[]', space=smem, size = 0x4, offset = 0x4, fixed_abs, tag = 'smem constant byte address 0x4 - core index']
  #allocation1 [shape = 'u32[72,128]{1,0:T(1,128)}', space=vmem, size = 0x9000, scoped, tag = 'internal scratch']
  #allocation2 [shape = 'bf16[8,18,4]{2,1,0:T(8,128)(2,1)}', space=vmem, size = 0xc000, scoped, tag = 'scratch operand']
  #allocation3 [shape = 'bf16[6,18,4]{2,1,0:T(8,128)(2,1)}', space=vmem, size = 0x9000, scoped, tag = 'scratch operand']
  %s0 = inlined_call_operand.vmem [shape: bf16[2,16,18,4], index: 0, kind: input, shape index: {}]
  %s1 = inlined_call_operand.vmem [shape: bf16[8,4,18,4], index: 1, kind: input, shape index: {}]
  %s2 = inlined_call_operand.vmem [shape: bf16[3,12,4], index: 2, kind: input, shape index: {}]
  %s3 = inlined_call_operand.vmem [shape: f32[1,4], index: 3, kind: input, shape index: {}]
  %s4 = inlined_call_operand.vmem [shape: bf16[3,12,4], index: 4, kind: input, shape index: {}]
  %s5 = inlined_call_operand.vmem [shape: f32[1,4], index: 5, kind: input, shape index: {}]
  %s6 = inlined_call_operand.vmem [shape: bf16[2,16,16,4], index: 6, kind: output, shape index: {}]
  %s7 = sld [smem:[#allocation0]]
  $region57: #{tpu_custom_call.1} parent=0
    _
  %s9 = ssub.s32 1, %s7
  %s10 = scalar_select 0, %s9, %s7
  loop: start=0, step=1, limit=10
  $region2: #{tpu_custom_call.1} parent=0 // loop_pre_header
    _
  $region3: #{tpu_custom_call.1} parent=0 // loop_header
    %s12 = sphi 0, %s16
    %p13 = scmp.ge.s32.totalorder %s12, 10
    %s19 = sphi 0, %s31
    %s20 = sphi 0, %s27
    %s21 = sphi 0, %s19
    %s22 = sphi 0, %s20
    %s23 = sphi 0, %s21
    %s24 = sphi 0, %s22
    %s36 = sphi 0, %s38
    %s39 = sphi 0, %s36
    %s40 = sphi 0, %s39
    %s56 = sphi 0, %s40
    %s66 = sphi 0, %s68
    %s69 = sphi 0, %s66
    %s70 = sphi 0, %s69
    %s86 = sphi 0, %s70
    %s90 = sphi 0, %s90
    %s92 = sphi 0, %s90
    %s93 = sphi 0, %s92
    %s107 = sphi 0, %s93
    %s111 = sphi 0, %s111
    %s113 = sphi 0, %s111
    %s114 = sphi 0, %s113
    %s128 = sphi 0, %s114
    %s132 = sphi 0, %s132
    %s134 = sphi 0, %s132
    %s135 = sphi 0, %s134
    %s149 = sphi 0, %s135
    %s153 = sphi 0, %s153
    %s155 = sphi 0, %s153
    %s156 = sphi 0, %s155
    %s170 = sphi 0, %s156
    %s178 = sphi 0, %s180
    %s181 = sphi 0, %s178
    %s182 = sphi 0, %s181
    %s198 = sphi 0, %s182
  $region4: #{tpu_custom_call.1} parent=0 // loop_header_branch
    %15 = sbr.rel (%p13) target = $region8
  $region5: #{tpu_custom_call.1} parent=0 // loop_body
    %s17 = ssub.s32 %s12, 1
    %s18 = ssub.s32 %s12, 2
    %s25 = sadd.s32 1, %s20
    %p26 = scmp.ge.s32.totalorder %s25, 4
    %s27 = scalar_select %p26, 0, %s25
    %s28 = sadd.s32 1, %s19
    %s29 = scalar_select %p26, %s28, %s19
    %p30 = scmp.ge.s32.totalorder %s29, 2
    %s31 = scalar_select %p30, 0, %s29
    %s32 = ssub.s32 %s19, %s31
    %s33 = ssub.s32 %s20, %s27
    %s34 = sor.u32 %s32, %s33
    %p35 = scmp.eq.s32.totalorder %s34, 0
    %s37 = sadd.s32 %s36, 1
    %s38 = scalar_select %p35, %s36, %s37
    %p41 = pneg %p35
    %p42 = scmp.eq.s32.totalorder %s12, 7
    %p43 = por %p41, %p42
    %p44 = scmp.ne.s32.totalorder %s36, %s39
    %p45 = scmp.eq.s32.totalorder %s12, 0
    %p46 = por %p44, %p45
    %p47 = scmp.ne.s32.totalorder %s36, %s39
    %p48 = scmp.eq.s32.totalorder %s17, 7
    %p49 = por %p47, %p48
    %p50 = scmp.ne.s32.totalorder %s39, %s40
    %p51 = scmp.eq.s32.totalorder %s17, 0
    %p52 = por %p50, %p51
    %p53 = scmp.ne.s32.totalorder %s39, %s40
    %p54 = scmp.eq.s32.totalorder %s18, 7
    %p55 = por %p53, %p54
    %p57 = scmp.ne.s32.totalorder %s40, %s56
    %p58 = scmp.eq.s32.totalorder %s18, 0
    %p59 = por %p57, %p58
    %s60 = smul.u32 %s19, 4
    %s61 = sadd.s32 %s60, %s20
    %s62 = smul.u32 %s31, 4
    %s63 = sadd.s32 %s62, %s27
    %s64 = ssub.s32 %s61, %s63
    %p65 = scmp.eq.s32.totalorder %s64, 0
    %s67 = sadd.s32 %s66, 1
    %s68 = scalar_select %p65, %s66, %s67
    %p71 = pneg %p65
    %p72 = scmp.eq.s32.totalorder %s12, 7
    %p73 = por %p71, %p72
    %p74 = scmp.ne.s32.totalorder %s66, %s69
    %p75 = scmp.eq.s32.totalorder %s12, 0
    %p76 = por %p74, %p75
    %p77 = scmp.ne.s32.totalorder %s66, %s69
    %p78 = scmp.eq.s32.totalorder %s17, 7
    %p79 = por %p77, %p78
    %p80 = scmp.ne.s32.totalorder %s69, %s70
    %p81 = scmp.eq.s32.totalorder %s17, 0
    %p82 = por %p80, %p81
    %p83 = scmp.ne.s32.totalorder %s69, %s70
    %p84 = scmp.eq.s32.totalorder %s18, 7
    %p85 = por %p83, %p84
    %p87 = scmp.ne.s32.totalorder %s70, %s86
    %p88 = scmp.eq.s32.totalorder %s18, 0
    %p89 = por %p87, %p88
    %s91 = sadd.s32 %s90, 1
    %p94 = scmp.eq.s32.totalorder %s12, 7
    %p95 = scmp.ne.s32.totalorder %s90, %s92
    %p96 = scmp.eq.s32.totalorder %s12, 0
    %p97 = por %p95, %p96
    %p98 = scmp.ne.s32.totalorder %s90, %s92
    %p99 = scmp.eq.s32.totalorder %s17, 7
    %p100 = por %p98, %p99
    %p101 = scmp.ne.s32.totalorder %s92, %s93
    %p102 = scmp.eq.s32.totalorder %s17, 0
    %p103 = por %p101, %p102
    %p104 = scmp.ne.s32.totalorder %s92, %s93
    %p105 = scmp.eq.s32.totalorder %s18, 7
    %p106 = por %p104, %p105
    %p108 = scmp.ne.s32.totalorder %s93, %s107
    %p109 = scmp.eq.s32.totalorder %s18, 0
    %p110 = por %p108, %p109
    %s112 = sadd.s32 %s111, 1
    %p115 = scmp.eq.s32.totalorder %s12, 7
    %p116 = scmp.ne.s32.totalorder %s111, %s113
    %p117 = scmp.eq.s32.totalorder %s12, 0
    %p118 = por %p116, %p117
    %p119 = scmp.ne.s32.totalorder %s111, %s113
    %p120 = scmp.eq.s32.totalorder %s17, 7
    %p121 = por %p119, %p120
    %p122 = scmp.ne.s32.totalorder %s113, %s114
    %p123 = scmp.eq.s32.totalorder %s17, 0
    %p124 = por %p122, %p123
    %p125 = scmp.ne.s32.totalorder %s113, %s114
    %p126 = scmp.eq.s32.totalorder %s18, 7
    %p127 = por %p125, %p126
    %p129 = scmp.ne.s32.totalorder %s114, %s128
    %p130 = scmp.eq.s32.totalorder %s18, 0
    %p131 = por %p129, %p130
    %s133 = sadd.s32 %s132, 1
    %p136 = scmp.eq.s32.totalorder %s12, 7
    %p137 = scmp.ne.s32.totalorder %s132, %s134
    %p138 = scmp.eq.s32.totalorder %s12, 0
    %p139 = por %p137, %p138
    %p140 = scmp.ne.s32.totalorder %s132, %s134
    %p141 = scmp.eq.s32.totalorder %s17, 7
    %p142 = por %p140, %p141
    %p143 = scmp.ne.s32.totalorder %s134, %s135
    %p144 = scmp.eq.s32.totalorder %s17, 0
    %p145 = por %p143, %p144
    %p146 = scmp.ne.s32.totalorder %s134, %s135
    %p147 = scmp.eq.s32.totalorder %s18, 7
    %p148 = por %p146, %p147
    %p150 = scmp.ne.s32.totalorder %s135, %s149
    %p151 = scmp.eq.s32.totalorder %s18, 0
    %p152 = por %p150, %p151
    %s154 = sadd.s32 %s153, 1
    %p157 = scmp.eq.s32.totalorder %s12, 7
    %p158 = scmp.ne.s32.totalorder %s153, %s155
    %p159 = scmp.eq.s32.totalorder %s12, 0
    %p160 = por %p158, %p159
    %p161 = scmp.ne.s32.totalorder %s153, %s155
    %p162 = scmp.eq.s32.totalorder %s17, 7
    %p163 = por %p161, %p162
    %p164 = scmp.ne.s32.totalorder %s155, %s156
    %p165 = scmp.eq.s32.totalorder %s17, 0
    %p166 = por %p164, %p165
    %p167 = scmp.ne.s32.totalorder %s155, %s156
    %p168 = scmp.eq.s32.totalorder %s18, 7
    %p169 = por %p167, %p168
    %p171 = scmp.ne.s32.totalorder %s156, %s170
    %p172 = scmp.eq.s32.totalorder %s18, 0
    %p173 = por %p171, %p172
    %s174 = ssub.s32 %s19, %s31
    %s175 = ssub.s32 %s20, %s27
    %s176 = sor.u32 %s174, %s175
    %p177 = scmp.eq.s32.totalorder %s176, 0
    %s179 = sadd.s32 %s178, 1
    %s180 = scalar_select %p177, %s178, %s179
    %p183 = pneg %p177
    %p184 = scmp.eq.s32.totalorder %s12, 7
    %p185 = por %p183, %p184
    %p186 = scmp.ne.s32.totalorder %s178, %s181
    %p187 = scmp.eq.s32.totalorder %s12, 0
    %p188 = por %p186, %p187
    %p189 = scmp.ne.s32.totalorder %s178, %s181
    %p190 = scmp.eq.s32.totalorder %s17, 7
    %p191 = por %p189, %p190
    %p192 = scmp.ne.s32.totalorder %s181, %s182
    %p193 = scmp.eq.s32.totalorder %s17, 0
    %p194 = por %p192, %p193
    %p195 = scmp.ne.s32.totalorder %s181, %s182
    %p196 = scmp.eq.s32.totalorder %s18, 7
    %p197 = por %p195, %p196
    %p199 = scmp.ne.s32.totalorder %s182, %s198
    %p200 = scmp.eq.s32.totalorder %s18, 0
    %p201 = por %p199, %p200
    %p202 = scmp.le.s32.totalorder 1, %s12
    %p203 = scmp.lt.s32.totalorder %s12, 9
    %p204 = pnand %p202, %p203
    %p205 = pneg %p204
    // Predicated region
    $region9: #{tpu_custom_call.1} parent=5 // pred_check
      _
    $region10: #{tpu_custom_call.1} parent=5 // pred_check_branch
      %207 = sbr.rel (%p204) target = $region12
    $region11: #{tpu_custom_call.1} parent=5 // pred_region
      %s208 = ssub.s32 %s12, 1
      // Predicated region
      $region13: #{tpu_custom_call.1} parent=11 // pred_check
        %p209 = pneg %p103
      $region14: #{tpu_custom_call.1} parent=11 // pred_check_branch
        %211 = sbr.rel (%p209) target = $region16
      $region15: #{tpu_custom_call.1} parent=11 // pred_region
        _
      $region16: #{tpu_custom_call.1} parent=11 // pred_fallthru
        _
      // Predicated region
      $region17: #{tpu_custom_call.1} parent=11 // pred_check
        %p212 = pneg %p124
      $region18: #{tpu_custom_call.1} parent=11 // pred_check_branch
        %214 = sbr.rel (%p212) target = $region20
      $region19: #{tpu_custom_call.1} parent=11 // pred_region
        _
      $region20: #{tpu_custom_call.1} parent=11 // pred_fallthru
        _
      // Predicated region
      $region21: #{tpu_custom_call.1} parent=11 // pred_check
        %p215 = pneg %p145
      $region22: #{tpu_custom_call.1} parent=11 // pred_check_branch
        %217 = sbr.rel (%p215) target = $region24
      $region23: #{tpu_custom_call.1} parent=11 // pred_region
        _
      $region24: #{tpu_custom_call.1} parent=11 // pred_fallthru
        _
      // Predicated region
      $region25: #{tpu_custom_call.1} parent=11 // pred_check
        %p218 = pneg %p166
      $region26: #{tpu_custom_call.1} parent=11 // pred_check_branch
        %220 = sbr.rel (%p218) target = $region28
      $region27: #{tpu_custom_call.1} parent=11 // pred_region
        _
      $region28: #{tpu_custom_call.1} parent=11 // pred_fallthru
        _
    $region12: #{tpu_custom_call.1} parent=5 // pred_fallthru
      _
    %p221 = scmp.lt.s32.totalorder %s12, 8
    // Predicated region
    $region29: #{tpu_custom_call.1} parent=5 // pred_check
      %p222 = pneg %p221
    $region30: #{tpu_custom_call.1} parent=5 // pred_check_branch
      %224 = sbr.rel (%p222) target = $region32
    $region31: #{tpu_custom_call.1} parent=5 // pred_region
      // Predicated region
      $region33: #{tpu_custom_call.1} parent=31 // pred_check
        %p225 = pneg %p46
      $region34: #{tpu_custom_call.1} parent=31 // pred_check_branch
        %227 = sbr.rel (%p225) target = $region36
      $region35: #{tpu_custom_call.1} parent=31 // pred_region
        %s228 = smul.u32 4, %s20
        %p229 = scmp.lt.s32.totalorder %s19, 1
        %s230 = scalar_select %p229, %s19, 1
        %p231 = scmp.lt.s32.totalorder %s228, 15
        %s232 = scalar_select %p231, %s228, 15
        %s233 = smul.addr %s232, 3
        %s234 = smul.addr %s230, 48
        %s235 = sadd.s32 %s233, %s234
        %s236 = smul.addr %s235, 4
        %s237 = scalar_lea.vmem %s0, %s236
        %s238 = smul.u32 4, %s20
      $region36: #{tpu_custom_call.1} parent=31 // pred_fallthru
        _
      // Predicated region
      $region37: #{tpu_custom_call.1} parent=31 // pred_check
        %p239 = pneg %p76
      $region38: #{tpu_custom_call.1} parent=31 // pred_check_branch
        %241 = sbr.rel (%p239) target = $region40
      $region39: #{tpu_custom_call.1} parent=31 // pred_region
        %s242 = smul.u32 %s19, 4
        %s243 = sadd.s32 %s242, %s20
        %p244 = scmp.lt.s32.totalorder %s243, 7
        %s245 = scalar_select %p244, %s243, 7
        %s246 = smul.addr %s245, 12
        %s247 = smul.addr %s246, 4
        %s248 = scalar_lea.vmem %s1, %s247
        %s249 = smul.u32 %s19, 4
        %s250 = sadd.s32 %s249, %s20
      $region40: #{tpu_custom_call.1} parent=31 // pred_fallthru
        _
    $region32: #{tpu_custom_call.1} parent=5 // pred_fallthru
      _
    %p251 = scmp.le.s32.totalorder 1, %s12
    %p252 = scmp.lt.s32.totalorder %s12, 9
    %p253 = pnand %p251, %p252
    %p254 = pneg %p253
    // Predicated region
    $region41: #{tpu_custom_call.1} parent=5 // pred_check
      _
    $region42: #{tpu_custom_call.1} parent=5 // pred_check_branch
      %256 = sbr.rel (%p253) target = $region44
    $region43: #{tpu_custom_call.1} parent=5 // pred_region
      %s257 = ssub.s32 %s12, 1
      %s258 = smul.u32 4, %s22
      %p259 = scmp.lt.s32.totalorder %s21, 1
      %s260 = scalar_select %p259, %s21, 1
      %p261 = scmp.lt.s32.totalorder %s258, 15
      %s262 = scalar_select %p261, %s258, 15
      %s263 = smul.addr %s262, 3
      %s264 = smul.addr %s260, 48
      %s265 = sadd.s32 %s263, %s264
      %s266 = smul.addr %s265, 4
      %s267 = scalar_lea.vmem %s0, %s266
      %p268 = pneg %p52
      %p269 = pneg %p49
      %s270 = smul.u32 %s21, 4
      %s271 = sadd.s32 %s270, %s22
      %p272 = scmp.lt.s32.totalorder %s271, 7
      %s273 = scalar_select %p272, %s271, 7
      %s274 = smul.addr %s273, 12
      %s275 = smul.addr %s274, 4
      %s276 = scalar_lea.vmem %s1, %s275
      %p277 = pneg %p82
      %p278 = pneg %p79
      %p279 = pneg %p103
      %p280 = pneg %p100
      %p281 = pneg %p124
      %p282 = pneg %p121
      %p283 = pneg %p145
      %p284 = pneg %p142
      %p285 = pneg %p166
      %p286 = pneg %p163
      %p287 = pneg %p194
      %p288 = pneg %p191
      %s289 = smul.u32 4, %s22
      %p290 = scmp.lt.s32.totalorder %s21, 1
      %s291 = scalar_select %p290, %s21, 1
      %p292 = scmp.lt.s32.totalorder %s289, 15
      %s293 = scalar_select %p292, %s289, 15
      %s294 = smul.addr %s293, 2
      %s295 = smul.addr %s291, 32
      %s296 = sadd.s32 %s294, %s295
      %s297 = smul.addr %s296, 4
      %s298 = scalar_lea.vmem %s6, %s297
      %s299 = smul.u32 4, %s22
      %p300 = scmp.lt.s32.totalorder %s21, 1
      %s301 = scalar_select %p300, %s21, 1
      %p302 = scmp.lt.s32.totalorder %s299, 15
      %s303 = scalar_select %p302, %s299, 15
      %s304 = smul.addr %s303, 3
      %s305 = smul.addr %s301, 48
      %s306 = sadd.s32 %s304, %s305
      %s307 = smul.addr %s306, 4
      %s308 = scalar_lea.vmem %s0, %s307
      %s309 = smul.u32 4, %s22
      %s310 = smul.u32 %s21, 4
      %s311 = sadd.s32 %s310, %s22
      %p312 = scmp.lt.s32.totalorder %s311, 7
      %s313 = scalar_select %p312, %s311, 7
      %s314 = smul.addr %s313, 12
      %s315 = smul.addr %s314, 4
      %s316 = scalar_lea.vmem %s1, %s315
      %s317 = smul.u32 %s21, 4
      %s318 = sadd.s32 %s317, %s22
      %s319 = smul.u32 4, %s22
      %p320 = scmp.lt.s32.totalorder %s21, 1
      %s321 = scalar_select %p320, %s21, 1
      %p322 = scmp.lt.s32.totalorder %s319, 15
      %s323 = scalar_select %p322, %s319, 15
      %s324 = smul.addr %s323, 2
      %s325 = smul.addr %s321, 32
      %s326 = sadd.s32 %s324, %s325
      %s327 = smul.addr %s326, 4
      %s328 = scalar_lea.vmem %s6, %s327
      %s329 = smul.u32 4, %s22
      %v331 = vld [vmem:[%s316] sm:$0xf]
      %v332 = vld [vmem:[%s316 + $0x4] sm:$0xf]
      %v333 = vld [vmem:[%s316 + $0x8] sm:$0x1]
      %v334 = vld [vmem:[%s316 + $0xc] sm:$0xf]
      %v335 = vld [vmem:[%s316 + $0x10] sm:$0xf]
      %v336 = vld [vmem:[%s316 + $0x14] sm:$0x1]
      %vm337 = vcmask 27648
      %338 = vst.msk [vmem:[#allocation2] sm:$0xf] %vm337, %v331
      %339 = vst.msk [vmem:[#allocation2 + $0x4] sm:$0xf] %vm337, %v332
      %vm340 = vcmask 24576
      %341 = vst.msk [vmem:[#allocation2 + $0x8] sm:$0x1] %vm340, %v333
      %342 = vst.msk [vmem:[#allocation2 + $0xc] sm:$0xf] %vm337, %v334
      %343 = vst.msk [vmem:[#allocation2 + $0x10] sm:$0xf] %vm337, %v335
      %344 = vst.msk [vmem:[#allocation2 + $0x14] sm:$0x1] %vm340, %v336
      %v345 = vld [vmem:[%s308] sm:$0xf]
      %v346 = vld [vmem:[%s308 + $0x4] sm:$0xf]
      %v347 = vld [vmem:[%s308 + $0x8] sm:$0x1]
      %v348 = vld [vmem:[%s308 + $0xc] sm:$0xf]
      %v349 = vld [vmem:[%s308 + $0x10] sm:$0xf]
      %v350 = vld [vmem:[%s308 + $0x14] sm:$0x1]
      %v351 = vld [vmem:[%s308 + $0x18] sm:$0xf]
      %v352 = vld [vmem:[%s308 + $0x1c] sm:$0xf]
      %v353 = vld [vmem:[%s308 + $0x20] sm:$0x1]
      %v354 = vld [vmem:[%s308 + $0x24] sm:$0xf]
      %v355 = vld [vmem:[%s308 + $0x28] sm:$0xf]
      %v356 = vld [vmem:[%s308 + $0x2c] sm:$0x1]
      %s357 = scalar_lea.vmem [#allocation2], 24
      %358 = vst.msk [vmem:[%s357] sm:$0xf] %vm337, %v345
      %359 = vst.msk [vmem:[%s357 + $0x4] sm:$0xf] %vm337, %v346
      %360 = vst.msk [vmem:[%s357 + $0x8] sm:$0x1] %vm340, %v347
      %361 = vst.msk [vmem:[%s357 + $0xc] sm:$0xf] %vm337, %v348
      %362 = vst.msk [vmem:[%s357 + $0x10] sm:$0xf] %vm337, %v349
      %363 = vst.msk [vmem:[%s357 + $0x14] sm:$0x1] %vm340, %v350
      %364 = vst.msk [vmem:[%s357 + $0x18] sm:$0xf] %vm337, %v351
      %365 = vst.msk [vmem:[%s357 + $0x1c] sm:$0xf] %vm337, %v352
      %366 = vst.msk [vmem:[%s357 + $0x20] sm:$0x1] %vm340, %v353
      %367 = vst.msk [vmem:[%s357 + $0x24] sm:$0xf] %vm337, %v354
      %368 = vst.msk [vmem:[%s357 + $0x28] sm:$0xf] %vm337, %v355
      %369 = vst.msk [vmem:[%s357 + $0x2c] sm:$0x1] %vm340, %v356
      %s370 = scalar_lea.vmem %s316, 24
      %v371 = vld [vmem:[%s370] sm:$0xf]
      %v372 = vld [vmem:[%s370 + $0x4] sm:$0xf]
      %v373 = vld [vmem:[%s370 + $0x8] sm:$0x1]
      %v374 = vld [vmem:[%s370 + $0xc] sm:$0xf]
      %v375 = vld [vmem:[%s370 + $0x10] sm:$0xf]
      %v376 = vld [vmem:[%s370 + $0x14] sm:$0x1]
      %s377 = scalar_lea.vmem [#allocation2], 72
      %378 = vst.msk [vmem:[%s377] sm:$0xf] %vm337, %v371
      %379 = vst.msk [vmem:[%s377 + $0x4] sm:$0xf] %vm337, %v372
      %380 = vst.msk [vmem:[%s377 + $0x8] sm:$0x1] %vm340, %v373
      %381 = vst.msk [vmem:[%s377 + $0xc] sm:$0xf] %vm337, %v374
      %382 = vst.msk [vmem:[%s377 + $0x10] sm:$0xf] %vm337, %v375
      %383 = vst.msk [vmem:[%s377 + $0x14] sm:$0x1] %vm340, %v376
      %v384 = vld [vmem:[#allocation2] sm:$0xf]
      %v385 = vld [vmem:[#allocation2 + $0x4] sm:$0xf]
      %v386 = vld [vmem:[#allocation2 + $0xc] sm:$0xf]
      %v387 = vld [vmem:[#allocation2 + $0x10] sm:$0xf]
      %v388 = vld [vmem:[#allocation2 + $0x18] sm:$0xf]
      %v389 = vld [vmem:[#allocation2 + $0x1c] sm:$0xf]
      %v390 = vld [vmem:[#allocation2 + $0x24] sm:$0xf]
      %v391 = vld [vmem:[#allocation2 + $0x28] sm:$0xf]
      %v392 = vld [vmem:[#allocation2 + $0x30] sm:$0xf]
      %v393 = vld [vmem:[#allocation2 + $0x34] sm:$0xf]
      %v394 = vld [vmem:[#allocation2 + $0x3c] sm:$0xf]
      %v395 = vld [vmem:[#allocation2 + $0x40] sm:$0xf]
      %v396 = vld [vmem:[#allocation2 + $0x8] sm:$0x1]
      %v397 = vld [vmem:[#allocation2 + $0x14] sm:$0x1]
      %v398 = vld [vmem:[#allocation2 + $0x20] sm:$0x1]
      %v399 = vld [vmem:[#allocation2 + $0x2c] sm:$0x1]
      %v400 = vld [vmem:[#allocation2 + $0x38] sm:$0x1]
      %v401 = vld [vmem:[#allocation2 + $0x44] sm:$0x1]
      %v402 = vld [vmem:[#allocation2] sm:$0xe]
      %v403 = vld [vmem:[#allocation2 + $0xc] sm:$0xe]
      %v404 = vld [vmem:[#allocation2 + $0x18] sm:$0xe]
      %v405 = vld [vmem:[#allocation2 + $0x24] sm:$0xe]
      %v406 = vld [vmem:[#allocation2 + $0x30] sm:$0xe]
      %v407 = vld [vmem:[#allocation2 + $0x3c] sm:$0xe]
      %v420 = vunpack.c.l.b16 %v384
      %v421 = vunpack.c.l.b16 %v385
      %v422 = vunpack.c.l.b16 %v386
      %v423 = vunpack.c.l.b16 %v387
      %v424 = vunpack.c.l.b16 %v388
      %v425 = vunpack.c.l.b16 %v389
      %v426 = vunpack.c.l.b16 %v390
      %v427 = vunpack.c.l.b16 %v391
      %v428 = vunpack.c.l.b16 %v392
      %v429 = vunpack.c.l.b16 %v393
      %v430 = vunpack.c.l.b16 %v394
      %v431 = vunpack.c.l.b16 %v395
      %v432 = vpack.c.b16 %v421, %v420
      %v433 = vpack.c.b16 %v423, %v422
      %v434 = vpack.c.b16 %v425, %v424
      %v435 = vpack.c.b16 %v427, %v426
      %v436 = vpack.c.b16 %v429, %v428
      %v437 = vpack.c.b16 %v431, %v430
      %v444 = vunpack.c.l.b16 %v396
      %v445 = vunpack.c.l.b16 %v397
      %v446 = vunpack.c.l.b16 %v398
      %v447 = vunpack.c.l.b16 %v399
      %v448 = vunpack.c.l.b16 %v400
      %v449 = vunpack.c.l.b16 %v401
      %v450 = vpack.c.b16 %v444, %v444
      %v451 = vpack.c.b16 %v445, %v445
      %v452 = vpack.c.b16 %v446, %v446
      %v453 = vpack.c.b16 %v447, %v447
      %v454 = vpack.c.b16 %v448, %v448
      %v455 = vpack.c.b16 %v449, %v449
      %vm456 = vsmask.f32 7424
      %v458 = vshrl.u32 %v432, 16
      %v460 = vshll.u32 %v432, 16
      %v462 = vrot.slane %v460, 1
      %v463 = vor.u32 %v458, %v462
      %v465 = vshll.u32 %v450, 16
      %v467 = vrot.slane %v465, 1
      %v468 = vsel %vm456, %v463, %v467
      %v470 = vshrl.u32 %v433, 16
      %v472 = vshll.u32 %v433, 16
      %v474 = vrot.slane %v472, 1
      %v475 = vor.u32 %v470, %v474
      %v477 = vshll.u32 %v451, 16
      %v479 = vrot.slane %v477, 1
      %v480 = vsel %vm456, %v475, %v479
      %v482 = vshrl.u32 %v434, 16
      %v484 = vshll.u32 %v434, 16
      %v486 = vrot.slane %v484, 1
      %v487 = vor.u32 %v482, %v486
      %v489 = vshll.u32 %v452, 16
      %v491 = vrot.slane %v489, 1
      %v492 = vsel %vm456, %v487, %v491
      %v494 = vshrl.u32 %v435, 16
      %v496 = vshll.u32 %v435, 16
      %v498 = vrot.slane %v496, 1
      %v499 = vor.u32 %v494, %v498
      %v501 = vshll.u32 %v453, 16
      %v503 = vrot.slane %v501, 1
      %v504 = vsel %vm456, %v499, %v503
      %v506 = vshrl.u32 %v436, 16
      %v508 = vshll.u32 %v436, 16
      %v510 = vrot.slane %v508, 1
      %v511 = vor.u32 %v506, %v510
      %v513 = vshll.u32 %v454, 16
      %v515 = vrot.slane %v513, 1
      %v516 = vsel %vm456, %v511, %v515
      %v518 = vshrl.u32 %v437, 16
      %v520 = vshll.u32 %v437, 16
      %v522 = vrot.slane %v520, 1
      %v523 = vor.u32 %v518, %v522
      %v525 = vshll.u32 %v455, 16
      %v527 = vrot.slane %v525, 1
      %v528 = vsel %vm456, %v523, %v527
      %529 = vrot.lane.b32.xlu0 %v468, 4
      %v530 = vpop.permute.xlu0 %529
      %531 = vrot.lane.b32.xlu0 %v480, 4
      %v532 = vpop.permute.xlu0 %531
      %533 = vrot.lane.b32.xlu0 %v492, 4
      %v534 = vpop.permute.xlu0 %533
      %535 = vrot.lane.b32.xlu0 %v504, 4
      %v536 = vpop.permute.xlu0 %535
      %537 = vrot.lane.b32.xlu0 %v516, 4
      %v538 = vpop.permute.xlu0 %537
      %539 = vrot.lane.b32.xlu0 %v528, 4
      %v540 = vpop.permute.xlu0 %539
      %v547 = vunpack.c.l.b16 %v402
      %v548 = vunpack.c.l.b16 %v403
      %v549 = vunpack.c.l.b16 %v404
      %v550 = vunpack.c.l.b16 %v405
      %v551 = vunpack.c.l.b16 %v406
      %v552 = vunpack.c.l.b16 %v407
      %v553 = vpack.c.b16 %v421, %v547
      %v554 = vpack.c.b16 %v423, %v548
      %v555 = vpack.c.b16 %v425, %v549
      %v556 = vpack.c.b16 %v427, %v550
      %v557 = vpack.c.b16 %v429, %v551
      %v558 = vpack.c.b16 %v431, %v552
      %vm559 = vcmask 1046528
      %v560 = vrot.slane %v553, 1
      %v561 = vrot.slane %v450, 1
      %v562 = vsel %vm559, %v560, %v561
      %v563 = vrot.slane %v554, 1
      %v564 = vrot.slane %v451, 1
      %v565 = vsel %vm559, %v563, %v564
      %v566 = vrot.slane %v555, 1
      %v567 = vrot.slane %v452, 1
      %v568 = vsel %vm559, %v566, %v567
      %v569 = vrot.slane %v556, 1
      %v570 = vrot.slane %v453, 1
      %v571 = vsel %vm559, %v569, %v570
      %v572 = vrot.slane %v557, 1
      %v573 = vrot.slane %v454, 1
      %v574 = vsel %vm559, %v572, %v573
      %v575 = vrot.slane %v558, 1
      %v576 = vrot.slane %v455, 1
      %v577 = vsel %vm559, %v575, %v576
      %578 = vrot.lane.b32.xlu0 %v562, 8
      %v579 = vpop.permute.xlu0 %578
      %580 = vrot.lane.b32.xlu0 %v565, 8
      %v581 = vpop.permute.xlu0 %580
      %582 = vrot.lane.b32.xlu0 %v568, 8
      %v583 = vpop.permute.xlu0 %582
      %584 = vrot.lane.b32.xlu0 %v571, 8
      %v585 = vpop.permute.xlu0 %584
      %586 = vrot.lane.b32.xlu0 %v574, 8
      %v587 = vpop.permute.xlu0 %586
      %588 = vrot.lane.b32.xlu0 %v577, 8
      %v589 = vpop.permute.xlu0 %588
      %vm590 = vcmask 31744
      %v592 = vsel %vm590, %v432, %v530
      %v594 = vsel %vm590, %v433, %v532
      %v596 = vsel %vm590, %v434, %v534
      %v598 = vsel %vm590, %v435, %v536
      %v600 = vsel %vm590, %v436, %v538
      %v602 = vsel %vm590, %v437, %v540
      %vm603 = vcmask 64512
      %v605 = vsel %vm603, %v592, %v579
      %v607 = vsel %vm603, %v594, %v581
      %v609 = vsel %vm603, %v596, %v583
      %v611 = vsel %vm603, %v598, %v585
      %v613 = vsel %vm603, %v600, %v587
      %v615 = vsel %vm603, %v602, %v589
      %v616 = vld [vmem:[%s2] sm:$0xf]
      %v617 = vld [vmem:[%s2 + $0x4] sm:$0x3]
      %s618 = scalar_lea.vmem [#allocation2], 12
      %v619 = vld [vmem:[%s618] sm:$0xf]
      %v620 = vld [vmem:[%s618 + $0x4] sm:$0xf]
      %v621 = vld [vmem:[%s618 + $0xc] sm:$0xf]
      %v622 = vld [vmem:[%s618 + $0x10] sm:$0xf]
      %v623 = vld [vmem:[%s618 + $0x18] sm:$0xf]
      %v624 = vld [vmem:[%s618 + $0x1c] sm:$0xf]
      %v625 = vld [vmem:[%s618 + $0x24] sm:$0xf]
      %v626 = vld [vmem:[%s618 + $0x28] sm:$0xf]
      %v627 = vld [vmem:[%s618 + $0x30] sm:$0xf]
      %v628 = vld [vmem:[%s618 + $0x34] sm:$0xf]
      %v629 = vld [vmem:[%s618 + $0x3c] sm:$0xf]
      %v630 = vld [vmem:[%s618 + $0x40] sm:$0xf]
      %v631 = vld [vmem:[%s618 + $0x8] sm:$0x1]
      %v632 = vld [vmem:[%s618 + $0x14] sm:$0x1]
      %v633 = vld [vmem:[%s618 + $0x20] sm:$0x1]
      %v634 = vld [vmem:[%s618 + $0x2c] sm:$0x1]
      %v635 = vld [vmem:[%s618 + $0x38] sm:$0x1]
      %v636 = vld [vmem:[%s618 + $0x44] sm:$0x1]
      %v637 = vld [vmem:[%s618] sm:$0xe]
      %v638 = vld [vmem:[%s618 + $0xc] sm:$0xe]
      %v639 = vld [vmem:[%s618 + $0x18] sm:$0xe]
      %v640 = vld [vmem:[%s618 + $0x24] sm:$0xe]
      %v641 = vld [vmem:[%s618 + $0x30] sm:$0xe]
      %v642 = vld [vmem:[%s618 + $0x3c] sm:$0xe]
      %v655 = vunpack.c.l.b16 %v619
      %v656 = vunpack.c.l.b16 %v620
      %v657 = vunpack.c.l.b16 %v621
      %v658 = vunpack.c.l.b16 %v622
      %v659 = vunpack.c.l.b16 %v623
      %v660 = vunpack.c.l.b16 %v624
      %v661 = vunpack.c.l.b16 %v625
      %v662 = vunpack.c.l.b16 %v626
      %v663 = vunpack.c.l.b16 %v627
      %v664 = vunpack.c.l.b16 %v628
      %v665 = vunpack.c.l.b16 %v629
      %v666 = vunpack.c.l.b16 %v630
      %v667 = vpack.c.b16 %v656, %v655
      %v668 = vpack.c.b16 %v658, %v657
      %v669 = vpack.c.b16 %v660, %v659
      %v670 = vpack.c.b16 %v662, %v661
      %v671 = vpack.c.b16 %v664, %v663
      %v672 = vpack.c.b16 %v666, %v665
      %v679 = vunpack.c.l.b16 %v631
      %v680 = vunpack.c.l.b16 %v632
      %v681 = vunpack.c.l.b16 %v633
      %v682 = vunpack.c.l.b16 %v634
      %v683 = vunpack.c.l.b16 %v635
      %v684 = vunpack.c.l.b16 %v636
      %v685 = vpack.c.b16 %v679, %v679
      %v686 = vpack.c.b16 %v680, %v680
      %v687 = vpack.c.b16 %v681, %v681
      %v688 = vpack.c.b16 %v682, %v682
      %v689 = vpack.c.b16 %v683, %v683
      %v690 = vpack.c.b16 %v684, %v684
      %v692 = vshrl.u32 %v667, 16
      %v694 = vshll.u32 %v667, 16
      %v696 = vrot.slane %v694, 1
      %v697 = vor.u32 %v692, %v696
      %v699 = vshll.u32 %v685, 16
      %v701 = vrot.slane %v699, 1
      %v702 = vsel %vm456, %v697, %v701
      %v704 = vshrl.u32 %v668, 16
      %v706 = vshll.u32 %v668, 16
      %v708 = vrot.slane %v706, 1
      %v709 = vor.u32 %v704, %v708
      %v711 = vshll.u32 %v686, 16
      %v713 = vrot.slane %v711, 1
      %v714 = vsel %vm456, %v709, %v713
      %v716 = vshrl.u32 %v669, 16
      %v718 = vshll.u32 %v669, 16
      %v720 = vrot.slane %v718, 1
      %v721 = vor.u32 %v716, %v720
      %v723 = vshll.u32 %v687, 16
      %v725 = vrot.slane %v723, 1
      %v726 = vsel %vm456, %v721, %v725
      %v728 = vshrl.u32 %v670, 16
      %v730 = vshll.u32 %v670, 16
      %v732 = vrot.slane %v730, 1
      %v733 = vor.u32 %v728, %v732
      %v735 = vshll.u32 %v688, 16
      %v737 = vrot.slane %v735, 1
      %v738 = vsel %vm456, %v733, %v737
      %v740 = vshrl.u32 %v671, 16
      %v742 = vshll.u32 %v671, 16
      %v744 = vrot.slane %v742, 1
      %v745 = vor.u32 %v740, %v744
      %v747 = vshll.u32 %v689, 16
      %v749 = vrot.slane %v747, 1
      %v750 = vsel %vm456, %v745, %v749
      %v752 = vshrl.u32 %v672, 16
      %v754 = vshll.u32 %v672, 16
      %v756 = vrot.slane %v754, 1
      %v757 = vor.u32 %v752, %v756
      %v759 = vshll.u32 %v690, 16
      %v761 = vrot.slane %v759, 1
      %v762 = vsel %vm456, %v757, %v761
      %763 = vrot.lane.b32.xlu0 %v702, 4
      %v764 = vpop.permute.xlu0 %763
      %765 = vrot.lane.b32.xlu0 %v714, 4
      %v766 = vpop.permute.xlu0 %765
      %767 = vrot.lane.b32.xlu0 %v726, 4
      %v768 = vpop.permute.xlu0 %767
      %769 = vrot.lane.b32.xlu0 %v738, 4
      %v770 = vpop.permute.xlu0 %769
      %771 = vrot.lane.b32.xlu0 %v750, 4
      %v772 = vpop.permute.xlu0 %771
      %773 = vrot.lane.b32.xlu0 %v762, 4
      %v774 = vpop.permute.xlu0 %773
      %v781 = vunpack.c.l.b16 %v637
      %v782 = vunpack.c.l.b16 %v638
      %v783 = vunpack.c.l.b16 %v639
      %v784 = vunpack.c.l.b16 %v640
      %v785 = vunpack.c.l.b16 %v641
      %v786 = vunpack.c.l.b16 %v642
      %v787 = vpack.c.b16 %v656, %v781
      %v788 = vpack.c.b16 %v658, %v782
      %v789 = vpack.c.b16 %v660, %v783
      %v790 = vpack.c.b16 %v662, %v784
      %v791 = vpack.c.b16 %v664, %v785
      %v792 = vpack.c.b16 %v666, %v786
      %v793 = vrot.slane %v787, 1
      %v794 = vrot.slane %v685, 1
      %v795 = vsel %vm559, %v793, %v794
      %v796 = vrot.slane %v788, 1
      %v797 = vrot.slane %v686, 1
      %v798 = vsel %vm559, %v796, %v797
      %v799 = vrot.slane %v789, 1
      %v800 = vrot.slane %v687, 1
      %v801 = vsel %vm559, %v799, %v800
      %v802 = vrot.slane %v790, 1
      %v803 = vrot.slane %v688, 1
      %v804 = vsel %vm559, %v802, %v803
      %v805 = vrot.slane %v791, 1
      %v806 = vrot.slane %v689, 1
      %v807 = vsel %vm559, %v805, %v806
      %v808 = vrot.slane %v792, 1
      %v809 = vrot.slane %v690, 1
      %v810 = vsel %vm559, %v808, %v809
      %811 = vrot.lane.b32.xlu0 %v795, 8
      %v812 = vpop.permute.xlu0 %811
      %813 = vrot.lane.b32.xlu0 %v798, 8
      %v814 = vpop.permute.xlu0 %813
      %815 = vrot.lane.b32.xlu0 %v801, 8
      %v816 = vpop.permute.xlu0 %815
      %817 = vrot.lane.b32.xlu0 %v804, 8
      %v818 = vpop.permute.xlu0 %817
      %819 = vrot.lane.b32.xlu0 %v807, 8
      %v820 = vpop.permute.xlu0 %819
      %821 = vrot.lane.b32.xlu0 %v810, 8
      %v822 = vpop.permute.xlu0 %821
      %v824 = vsel %vm590, %v667, %v764
      %v826 = vsel %vm590, %v668, %v766
      %v828 = vsel %vm590, %v669, %v768
      %v830 = vsel %vm590, %v670, %v770
      %v832 = vsel %vm590, %v671, %v772
      %v834 = vsel %vm590, %v672, %v774
      %v836 = vsel %vm603, %v824, %v812
      %v838 = vsel %vm603, %v826, %v814
      %v840 = vsel %vm603, %v828, %v816
      %v842 = vsel %vm603, %v830, %v818
      %v844 = vsel %vm603, %v832, %v820
      %v846 = vsel %vm603, %v834, %v822
      %s847 = scalar_lea.vmem %s2, 8
      %v848 = vld [vmem:[%s847] sm:$0xf]
      %v849 = vld [vmem:[%s847 + $0x4] sm:$0x3]
      %v852 = vunpack.c.l.b16 %v848
      %v853 = vunpack.c.l.b16 %v849
      %v854 = vpack.c.b16 %v853, %v852
      %vm855 = vcmask 97280
      %v856 = vsel %vm855, %v836, 0
      %v858 = vsel %vm855, %v838, 0
      %v860 = vsel %vm855, %v840, 0
      %v862 = vsel %vm855, %v842, 0
      %v864 = vsel %vm855, %v844, 0
      %v866 = vsel %vm855, %v846, 0
      %vm868 = vcmask 1045504
      %v870 = vsel %vm868, %v854, 0
      %872 = vmatpush.bf16.msra.mxu0 0
      %873 = vmatpush.bf16.msra.mxu0 0
      %874 = vmatpush.bf16.msra.mxu0 0
      %875 = vmatpush.bf16.msra.mxu0 0
      %876 = vmatpush.bf16.msra.mxu0 0
      %877 = vmatpush.bf16.msra.mxu0 0
      %878 = vmatpush.bf16.msra.mxu0 0
      %879 = vmatpush.bf16.msra.mxu0 %v870
      %880 = vmatmul.bf16.gmra.mxu0 %v856
      %v881 = vpop.f32.mrf.mxu0
      %v882 = vadd.f32 0.0, %v881
      %v883 = vpop.f32.mrf.mxu0
      %v884 = vadd.f32 0.0, %v883
      %885 = vmatmul.bf16.gmra.mxu0 %v858
      %v886 = vpop.f32.mrf.mxu0
      %v887 = vadd.f32 0.0, %v886
      %v888 = vpop.f32.mrf.mxu0
      %v889 = vadd.f32 0.0, %v888
      %890 = vmatmul.bf16.gmra.mxu0 %v860
      %v891 = vpop.f32.mrf.mxu0
      %v892 = vadd.f32 0.0, %v891
      %v893 = vpop.f32.mrf.mxu0
      %v894 = vadd.f32 0.0, %v893
      %895 = vmatmul.bf16.gmra.mxu0 %v862
      %v896 = vpop.f32.mrf.mxu0
      %v897 = vadd.f32 0.0, %v896
      %v898 = vpop.f32.mrf.mxu0
      %v899 = vadd.f32 0.0, %v898
      %900 = vmatmul.bf16.gmra.mxu0 %v864
      %v901 = vpop.f32.mrf.mxu0
      %v902 = vadd.f32 0.0, %v901
      %v903 = vpop.f32.mrf.mxu0
      %v904 = vadd.f32 0.0, %v903
      %905 = vmatmul.bf16.gmra.mxu0 %v866
      %v906 = vpop.f32.mrf.mxu0
      %v907 = vadd.f32 0.0, %v906
      %v908 = vpop.f32.mrf.mxu0
      %v909 = vadd.f32 0.0, %v908
      %910 = vdwg.mxu0
      %v913 = vunpack.c.l.b16 %v616
      %v914 = vunpack.c.l.b16 %v617
      %v915 = vpack.c.b16 %v914, %v913
      %v916 = vsel %vm855, %v605, 0
      %v918 = vsel %vm855, %v607, 0
      %v920 = vsel %vm855, %v609, 0
      %v922 = vsel %vm855, %v611, 0
      %v924 = vsel %vm855, %v613, 0
      %v926 = vsel %vm855, %v615, 0
      %v929 = vsel %vm868, %v915, 0
      %931 = vmatpush.bf16.msra.mxu0 0
      %932 = vmatpush.bf16.msra.mxu0 0
      %933 = vmatpush.bf16.msra.mxu0 0
      %934 = vmatpush.bf16.msra.mxu0 0
      %935 = vmatpush.bf16.msra.mxu0 0
      %936 = vmatpush.bf16.msra.mxu0 0
      %937 = vmatpush.bf16.msra.mxu0 0
      %938 = vmatpush.bf16.msra.mxu0 %v929
      %939 = vmatmul.bf16.gmra.mxu0 %v916
      %v940 = vpop.f32.mrf.mxu0
      %v941 = vadd.f32 %v882, %v940
      %v942 = vpop.f32.mrf.mxu0
      %v943 = vadd.f32 %v884, %v942
      %944 = vmatmul.bf16.gmra.mxu0 %v918
      %v945 = vpop.f32.mrf.mxu0
      %v946 = vadd.f32 %v887, %v945
      %v947 = vpop.f32.mrf.mxu0
      %v948 = vadd.f32 %v889, %v947
      %949 = vmatmul.bf16.gmra.mxu0 %v920
      %v950 = vpop.f32.mrf.mxu0
      %v951 = vadd.f32 %v892, %v950
      %v952 = vpop.f32.mrf.mxu0
      %v953 = vadd.f32 %v894, %v952
      %954 = vmatmul.bf16.gmra.mxu0 %v922
      %v955 = vpop.f32.mrf.mxu0
      %v956 = vadd.f32 %v897, %v955
      %v957 = vpop.f32.mrf.mxu0
      %v958 = vadd.f32 %v899, %v957
      %959 = vmatmul.bf16.gmra.mxu0 %v924
      %v960 = vpop.f32.mrf.mxu0
      %v961 = vadd.f32 %v902, %v960
      %v962 = vpop.f32.mrf.mxu0
      %v963 = vadd.f32 %v904, %v962
      %964 = vmatmul.bf16.gmra.mxu0 %v926
      %v965 = vpop.f32.mrf.mxu0
      %v966 = vadd.f32 %v907, %v965
      %v967 = vpop.f32.mrf.mxu0
      %v968 = vadd.f32 %v909, %v967
      %969 = vdwg.mxu0
      %v970 = vld [vmem:[%s357] sm:$0xf]
      %v971 = vld [vmem:[%s357 + $0x4] sm:$0xf]
      %v972 = vld [vmem:[%s357 + $0xc] sm:$0xf]
      %v973 = vld [vmem:[%s357 + $0x10] sm:$0xf]
      %v974 = vld [vmem:[%s357 + $0x18] sm:$0xf]
      %v975 = vld [vmem:[%s357 + $0x1c] sm:$0xf]
      %v976 = vld [vmem:[%s357 + $0x24] sm:$0xf]
      %v977 = vld [vmem:[%s357 + $0x28] sm:$0xf]
      %v978 = vld [vmem:[%s357 + $0x30] sm:$0xf]
      %v979 = vld [vmem:[%s357 + $0x34] sm:$0xf]
      %v980 = vld [vmem:[%s357 + $0x3c] sm:$0xf]
      %v981 = vld [vmem:[%s357 + $0x40] sm:$0xf]
      %v982 = vld [vmem:[%s357 + $0x8] sm:$0x1]
      %v983 = vld [vmem:[%s357 + $0x14] sm:$0x1]
      %v984 = vld [vmem:[%s357 + $0x20] sm:$0x1]
      %v985 = vld [vmem:[%s357 + $0x2c] sm:$0x1]
      %v986 = vld [vmem:[%s357 + $0x38] sm:$0x1]
      %v987 = vld [vmem:[%s357 + $0x44] sm:$0x1]
      %v988 = vld [vmem:[%s357] sm:$0xe]
      %v989 = vld [vmem:[%s357 + $0xc] sm:$0xe]
      %v990 = vld [vmem:[%s357 + $0x18] sm:$0xe]
      %v991 = vld [vmem:[%s357 + $0x24] sm:$0xe]
      %v992 = vld [vmem:[%s357 + $0x30] sm:$0xe]
      %v993 = vld [vmem:[%s357 + $0x3c] sm:$0xe]
      %v1006 = vunpack.c.l.b16 %v970
      %v1007 = vunpack.c.l.b16 %v971
      %v1008 = vunpack.c.l.b16 %v972
      %v1009 = vunpack.c.l.b16 %v973
      %v1010 = vunpack.c.l.b16 %v974
      %v1011 = vunpack.c.l.b16 %v975
      %v1012 = vunpack.c.l.b16 %v976
      %v1013 = vunpack.c.l.b16 %v977
      %v1014 = vunpack.c.l.b16 %v978
      %v1015 = vunpack.c.l.b16 %v979
      %v1016 = vunpack.c.l.b16 %v980
      %v1017 = vunpack.c.l.b16 %v981
      %v1018 = vpack.c.b16 %v1007, %v1006
      %v1019 = vpack.c.b16 %v1009, %v1008
      %v1020 = vpack.c.b16 %v1011, %v1010
      %v1021 = vpack.c.b16 %v1013, %v1012
      %v1022 = vpack.c.b16 %v1015, %v1014
      %v1023 = vpack.c.b16 %v1017, %v1016
      %v1030 = vunpack.c.l.b16 %v982
      %v1031 = vunpack.c.l.b16 %v983
      %v1032 = vunpack.c.l.b16 %v984
      %v1033 = vunpack.c.l.b16 %v985
      %v1034 = vunpack.c.l.b16 %v986
      %v1035 = vunpack.c.l.b16 %v987
      %v1036 = vpack.c.b16 %v1030, %v1030
      %v1037 = vpack.c.b16 %v1031, %v1031
      %v1038 = vpack.c.b16 %v1032, %v1032
      %v1039 = vpack.c.b16 %v1033, %v1033
      %v1040 = vpack.c.b16 %v1034, %v1034
      %v1041 = vpack.c.b16 %v1035, %v1035
      %v1043 = vshrl.u32 %v1018, 16
      %v1045 = vshll.u32 %v1018, 16
      %v1047 = vrot.slane %v1045, 1
      %v1048 = vor.u32 %v1043, %v1047
      %v1050 = vshll.u32 %v1036, 16
      %v1052 = vrot.slane %v1050, 1
      %v1053 = vsel %vm456, %v1048, %v1052
      %v1055 = vshrl.u32 %v1019, 16
      %v1057 = vshll.u32 %v1019, 16
      %v1059 = vrot.slane %v1057, 1
      %v1060 = vor.u32 %v1055, %v1059
      %v1062 = vshll.u32 %v1037, 16
      %v1064 = vrot.slane %v1062, 1
      %v1065 = vsel %vm456, %v1060, %v1064
      %v1067 = vshrl.u32 %v1020, 16
      %v1069 = vshll.u32 %v1020, 16
      %v1071 = vrot.slane %v1069, 1
      %v1072 = vor.u32 %v1067, %v1071
      %v1074 = vshll.u32 %v1038, 16
      %v1076 = vrot.slane %v1074, 1
      %v1077 = vsel %vm456, %v1072, %v1076
      %v1079 = vshrl.u32 %v1021, 16
      %v1081 = vshll.u32 %v1021, 16
      %v1083 = vrot.slane %v1081, 1
      %v1084 = vor.u32 %v1079, %v1083
      %v1086 = vshll.u32 %v1039, 16
      %v1088 = vrot.slane %v1086, 1
      %v1089 = vsel %vm456, %v1084, %v1088
      %v1091 = vshrl.u32 %v1022, 16
      %v1093 = vshll.u32 %v1022, 16
      %v1095 = vrot.slane %v1093, 1
      %v1096 = vor.u32 %v1091, %v1095
      %v1098 = vshll.u32 %v1040, 16
      %v1100 = vrot.slane %v1098, 1
      %v1101 = vsel %vm456, %v1096, %v1100
      %v1103 = vshrl.u32 %v1023, 16
      %v1105 = vshll.u32 %v1023, 16
      %v1107 = vrot.slane %v1105, 1
      %v1108 = vor.u32 %v1103, %v1107
      %v1110 = vshll.u32 %v1041, 16
      %v1112 = vrot.slane %v1110, 1
      %v1113 = vsel %vm456, %v1108, %v1112
      %1114 = vrot.lane.b32.xlu0 %v1053, 4
      %v1115 = vpop.permute.xlu0 %1114
      %1116 = vrot.lane.b32.xlu0 %v1065, 4
      %v1117 = vpop.permute.xlu0 %1116
      %1118 = vrot.lane.b32.xlu0 %v1077, 4
      %v1119 = vpop.permute.xlu0 %1118
      %1120 = vrot.lane.b32.xlu0 %v1089, 4
      %v1121 = vpop.permute.xlu0 %1120
      %1122 = vrot.lane.b32.xlu0 %v1101, 4
      %v1123 = vpop.permute.xlu0 %1122
      %1124 = vrot.lane.b32.xlu0 %v1113, 4
      %v1125 = vpop.permute.xlu0 %1124
      %v1132 = vunpack.c.l.b16 %v988
      %v1133 = vunpack.c.l.b16 %v989
      %v1134 = vunpack.c.l.b16 %v990
      %v1135 = vunpack.c.l.b16 %v991
      %v1136 = vunpack.c.l.b16 %v992
      %v1137 = vunpack.c.l.b16 %v993
      %v1138 = vpack.c.b16 %v1007, %v1132
      %v1139 = vpack.c.b16 %v1009, %v1133
      %v1140 = vpack.c.b16 %v1011, %v1134
      %v1141 = vpack.c.b16 %v1013, %v1135
      %v1142 = vpack.c.b16 %v1015, %v1136
      %v1143 = vpack.c.b16 %v1017, %v1137
      %v1144 = vrot.slane %v1138, 1
      %v1145 = vrot.slane %v1036, 1
      %v1146 = vsel %vm559, %v1144, %v1145
      %v1147 = vrot.slane %v1139, 1
      %v1148 = vrot.slane %v1037, 1
      %v1149 = vsel %vm559, %v1147, %v1148
      %v1150 = vrot.slane %v1140, 1
      %v1151 = vrot.slane %v1038, 1
      %v1152 = vsel %vm559, %v1150, %v1151
      %v1153 = vrot.slane %v1141, 1
      %v1154 = vrot.slane %v1039, 1
      %v1155 = vsel %vm559, %v1153, %v1154
      %v1156 = vrot.slane %v1142, 1
      %v1157 = vrot.slane %v1040, 1
      %v1158 = vsel %vm559, %v1156, %v1157
      %v1159 = vrot.slane %v1143, 1
      %v1160 = vrot.slane %v1041, 1
      %v1161 = vsel %vm559, %v1159, %v1160
      %1162 = vrot.lane.b32.xlu0 %v1146, 8
      %v1163 = vpop.permute.xlu0 %1162
      %1164 = vrot.lane.b32.xlu0 %v1149, 8
      %v1165 = vpop.permute.xlu0 %1164
      %1166 = vrot.lane.b32.xlu0 %v1152, 8
      %v1167 = vpop.permute.xlu0 %1166
      %1168 = vrot.lane.b32.xlu0 %v1155, 8
      %v1169 = vpop.permute.xlu0 %1168
      %1170 = vrot.lane.b32.xlu0 %v1158, 8
      %v1171 = vpop.permute.xlu0 %1170
      %1172 = vrot.lane.b32.xlu0 %v1161, 8
      %v1173 = vpop.permute.xlu0 %1172
      %v1175 = vsel %vm590, %v1018, %v1115
      %v1177 = vsel %vm590, %v1019, %v1117
      %v1179 = vsel %vm590, %v1020, %v1119
      %v1181 = vsel %vm590, %v1021, %v1121
      %v1183 = vsel %vm590, %v1022, %v1123
      %v1185 = vsel %vm590, %v1023, %v1125
      %v1187 = vsel %vm603, %v1175, %v1163
      %v1189 = vsel %vm603, %v1177, %v1165
      %v1191 = vsel %vm603, %v1179, %v1167
      %v1193 = vsel %vm603, %v1181, %v1169
      %v1195 = vsel %vm603, %v1183, %v1171
      %v1197 = vsel %vm603, %v1185, %v1173
      %s1198 = scalar_lea.vmem %s2, 16
      %v1199 = vld [vmem:[%s1198] sm:$0xf]
      %v1200 = vld [vmem:[%s1198 + $0x4] sm:$0x3]
      %v1203 = vunpack.c.l.b16 %v1199
      %v1204 = vunpack.c.l.b16 %v1200
      %v1205 = vpack.c.b16 %v1204, %v1203
      %v1206 = vsel %vm855, %v1187, 0
      %v1208 = vsel %vm855, %v1189, 0
      %v1210 = vsel %vm855, %v1191, 0
      %v1212 = vsel %vm855, %v1193, 0
      %v1214 = vsel %vm855, %v1195, 0
      %v1216 = vsel %vm855, %v1197, 0
      %v1219 = vsel %vm868, %v1205, 0
      %1221 = vmatpush.bf16.msra.mxu0 0
      %1222 = vmatpush.bf16.msra.mxu0 0
      %1223 = vmatpush.bf16.msra.mxu0 0
      %1224 = vmatpush.bf16.msra.mxu0 0
      %1225 = vmatpush.bf16.msra.mxu0 0
      %1226 = vmatpush.bf16.msra.mxu0 0
      %1227 = vmatpush.bf16.msra.mxu0 0
      %1228 = vmatpush.bf16.msra.mxu0 %v1219
      %1229 = vmatmul.bf16.gmra.mxu0 %v1206
      %v1230 = vpop.f32.mrf.mxu0
      %v1231 = vadd.f32 0.0, %v1230
      %v1232 = vpop.f32.mrf.mxu0
      %v1233 = vadd.f32 0.0, %v1232
      %1234 = vmatmul.bf16.gmra.mxu0 %v1208
      %v1235 = vpop.f32.mrf.mxu0
      %v1236 = vadd.f32 0.0, %v1235
      %v1237 = vpop.f32.mrf.mxu0
      %v1238 = vadd.f32 0.0, %v1237
      %1239 = vmatmul.bf16.gmra.mxu0 %v1210
      %v1240 = vpop.f32.mrf.mxu0
      %v1241 = vadd.f32 0.0, %v1240
      %v1242 = vpop.f32.mrf.mxu0
      %v1243 = vadd.f32 0.0, %v1242
      %1244 = vmatmul.bf16.gmra.mxu0 %v1212
      %v1245 = vpop.f32.mrf.mxu0
      %v1246 = vadd.f32 0.0, %v1245
      %v1247 = vpop.f32.mrf.mxu0
      %v1248 = vadd.f32 0.0, %v1247
      %1249 = vmatmul.bf16.gmra.mxu0 %v1214
      %v1250 = vpop.f32.mrf.mxu0
      %v1251 = vadd.f32 0.0, %v1250
      %v1252 = vpop.f32.mrf.mxu0
      %v1253 = vadd.f32 0.0, %v1252
      %1254 = vmatmul.bf16.gmra.mxu0 %v1216
      %v1255 = vpop.f32.mrf.mxu0
      %v1256 = vadd.f32 0.0, %v1255
      %v1257 = vpop.f32.mrf.mxu0
      %v1258 = vadd.f32 0.0, %v1257
      %1259 = vdwg.mxu0
      %v1260 = vadd.f32 %v941, %v1231
      %v1261 = vadd.f32 %v943, %v1233
      %v1262 = vadd.f32 %v946, %v1236
      %v1263 = vadd.f32 %v948, %v1238
      %v1264 = vadd.f32 %v951, %v1241
      %v1265 = vadd.f32 %v953, %v1243
      %v1266 = vadd.f32 %v956, %v1246
      %v1267 = vadd.f32 %v958, %v1248
      %v1268 = vadd.f32 %v961, %v1251
      %v1269 = vadd.f32 %v963, %v1253
      %v1270 = vadd.f32 %v966, %v1256
      %v1271 = vadd.f32 %v968, %v1258
      %v1272 = vld [vmem:[%s3] sm:$0x1]
      %v1274 = vperm.slane %v1272, 0
      %v1276 = vadd.f32 %v1260, %v1274
      %v1277 = vadd.f32 %v1261, %v1274
      %v1278 = vadd.f32 %v1262, %v1274
      %v1279 = vadd.f32 %v1263, %v1274
      %v1280 = vadd.f32 %v1264, %v1274
      %v1281 = vadd.f32 %v1265, %v1274
      %v1282 = vadd.f32 %v1266, %v1274
      %v1283 = vadd.f32 %v1267, %v1274
      %v1284 = vadd.f32 %v1268, %v1274
      %v1285 = vadd.f32 %v1269, %v1274
      %v1286 = vadd.f32 %v1270, %v1274
      %v1287 = vadd.f32 %v1271, %v1274
      %v1288 = vmax.f32 %v1276, 0.0
      %v1289 = vmax.f32 %v1277, 0.0
      %v1290 = vmax.f32 %v1278, 0.0
      %v1291 = vmax.f32 %v1279, 0.0
      %v1292 = vmax.f32 %v1280, 0.0
      %v1293 = vmax.f32 %v1281, 0.0
      %v1294 = vmax.f32 %v1282, 0.0
      %v1295 = vmax.f32 %v1283, 0.0
      %v1296 = vmax.f32 %v1284, 0.0
      %v1297 = vmax.f32 %v1285, 0.0
      %v1298 = vmax.f32 %v1286, 0.0
      %v1299 = vmax.f32 %v1287, 0.0
      %s1300 = smul.u32 %s22, 4
      %s1301 = ssub.s32 %s1300, 1
      %v1302 = vstv %s1301
      %v1303 = vadd.s32 %v1302, 1
      %v1304 = vadd.s32 %v1302, 2
      %v1305 = vadd.s32 %v1302, 3
      %v1306 = vadd.s32 %v1302, 4
      %v1307 = vadd.s32 %v1302, 5
      %vm1308 = vcmp.ge.s32.totalorder %v1302, 0
      %vm1309 = vcmp.ge.s32.totalorder %v1303, 0
      %vm1310 = vcmp.ge.s32.totalorder %v1304, 0
      %vm1311 = vcmp.ge.s32.totalorder %v1305, 0
      %vm1312 = vcmp.ge.s32.totalorder %v1306, 0
      %vm1313 = vcmp.ge.s32.totalorder %v1307, 0
      %vm1314 = vcmp.lt.s32.totalorder %v1302, 16
      %vm1315 = vcmp.lt.s32.totalorder %v1303, 16
      %vm1316 = vcmp.lt.s32.totalorder %v1304, 16
      %vm1317 = vcmp.lt.s32.totalorder %v1305, 16
      %vm1318 = vcmp.lt.s32.totalorder %v1306, 16
      %vm1319 = vcmp.lt.s32.totalorder %v1307, 16
      %vm1320 = vmand %vm1308, %vm1314
      %vm1321 = vmand %vm1309, %vm1315
      %vm1322 = vmand %vm1310, %vm1316
      %vm1323 = vmand %vm1311, %vm1317
      %vm1324 = vmand %vm1312, %vm1318
      %vm1325 = vmand %vm1313, %vm1319
      %v1326 = vsel %vm1320, 1, 0
      %v1327 = vsel %vm1321, 1, 0
      %v1328 = vsel %vm1322, 1, 0
      %v1329 = vsel %vm1323, 1, 0
      %v1330 = vsel %vm1324, 1, 0
      %v1331 = vsel %vm1325, 1, 0
      %vm1332 = vcmp.eq.s32.totalorder %v1326, 1
      %vm1333 = vcmp.eq.s32.totalorder %v1327, 1
      %vm1334 = vcmp.eq.s32.totalorder %v1328, 1
      %vm1335 = vcmp.eq.s32.totalorder %v1329, 1
      %vm1336 = vcmp.eq.s32.totalorder %v1330, 1
      %vm1337 = vcmp.eq.s32.totalorder %v1331, 1
      %v1338 = vsel %vm1332, %v1288, 0.0
      %v1339 = vsel %vm1332, %v1289, 0.0
      %v1340 = vsel %vm1333, %v1290, 0.0
      %v1341 = vsel %vm1333, %v1291, 0.0
      %v1342 = vsel %vm1334, %v1292, 0.0
      %v1343 = vsel %vm1334, %v1293, 0.0
      %v1344 = vsel %vm1335, %v1294, 0.0
      %v1345 = vsel %vm1335, %v1295, 0.0
      %v1346 = vsel %vm1336, %v1296, 0.0
      %v1347 = vsel %vm1336, %v1297, 0.0
      %v1348 = vsel %vm1337, %v1298, 0.0
      %v1349 = vsel %vm1337, %v1299, 0.0
      %vm1350 = vcmask 24576
      %vm1351 = vsmask.f32 256
      %vm1352 = vmand %vm1350, %vm1351
      %v1353 = vld [vmem:[#allocation3] sm:$0x1]
      %v1354 = vsel %vm1352, 0, %v1353
      %1355 = vst [vmem:[#allocation3] sm:$0x1] %v1354
      %v1356 = vld [vmem:[#allocation3 + $0xc] sm:$0x1]
      %v1357 = vsel %vm1352, 0, %v1356
      %1358 = vst [vmem:[#allocation3 + $0xc] sm:$0x1] %v1357
      %v1359 = vld [vmem:[#allocation3 + $0x18] sm:$0x1]
      %v1360 = vsel %vm1352, 0, %v1359
      %1361 = vst [vmem:[#allocation3 + $0x18] sm:$0x1] %v1360
      %v1362 = vld [vmem:[#allocation3 + $0x24] sm:$0x1]
      %v1363 = vsel %vm1352, 0, %v1362
      %1364 = vst [vmem:[#allocation3 + $0x24] sm:$0x1] %v1363
      %v1365 = vld [vmem:[#allocation3 + $0x30] sm:$0x1]
      %v1366 = vsel %vm1352, 0, %v1365
      %1367 = vst [vmem:[#allocation3 + $0x30] sm:$0x1] %v1366
      %v1368 = vld [vmem:[#allocation3 + $0x3c] sm:$0x1]
      %v1369 = vsel %vm1352, 0, %v1368
      %1370 = vst [vmem:[#allocation3 + $0x3c] sm:$0x1] %v1369
      %vm1371 = vsmask.f32 7938
      %vm1372 = vmand %vm1350, %vm1371
      %v1373 = vld [vmem:[#allocation3 + $0x8] sm:$0x1]
      %v1374 = vsel %vm1372, 0, %v1373
      %1375 = vst [vmem:[#allocation3 + $0x8] sm:$0x1] %v1374
      %v1376 = vld [vmem:[#allocation3 + $0x14] sm:$0x1]
      %v1377 = vsel %vm1372, 0, %v1376
      %1378 = vst [vmem:[#allocation3 + $0x14] sm:$0x1] %v1377
      %v1379 = vld [vmem:[#allocation3 + $0x20] sm:$0x1]
      %v1380 = vsel %vm1372, 0, %v1379
      %1381 = vst [vmem:[#allocation3 + $0x20] sm:$0x1] %v1380
      %v1382 = vld [vmem:[#allocation3 + $0x2c] sm:$0x1]
      %v1383 = vsel %vm1372, 0, %v1382
      %1384 = vst [vmem:[#allocation3 + $0x2c] sm:$0x1] %v1383
      %v1385 = vld [vmem:[#allocation3 + $0x38] sm:$0x1]
      %v1386 = vsel %vm1372, 0, %v1385
      %1387 = vst [vmem:[#allocation3 + $0x38] sm:$0x1] %v1386
      %v1388 = vld [vmem:[#allocation3 + $0x44] sm:$0x1]
      %v1389 = vsel %vm1372, 0, %v1388
      %1390 = vst [vmem:[#allocation3 + $0x44] sm:$0x1] %v1389
      %v1391 = vpack.c.bf16 %v1338, %v1338
      %v1392 = vpack.c.bf16 %v1339, %v1339
      %v1393 = vpack.c.bf16 %v1340, %v1340
      %v1394 = vpack.c.bf16 %v1341, %v1341
      %v1395 = vpack.c.bf16 %v1342, %v1342
      %v1396 = vpack.c.bf16 %v1343, %v1343
      %v1397 = vpack.c.bf16 %v1344, %v1344
      %v1398 = vpack.c.bf16 %v1345, %v1345
      %v1399 = vpack.c.bf16 %v1346, %v1346
      %v1400 = vpack.c.bf16 %v1347, %v1347
      %v1401 = vpack.c.bf16 %v1348, %v1348
      %v1402 = vpack.c.bf16 %v1349, %v1349
      %vm1403 = vsmask.f32 4368
      %vm1404 = vmor %vm1351, %vm1403
      %v1406 = vshrl.u32 %v1391, 16
      %v1408 = vrot.slane %v1406, 7
      %v1409 = vshll.u32 %v1391, 16
      %v1411 = vor.u32 %v1408, %v1409
      %v1412 = vrot.slane %v1408, 4
      %v1414 = vshrl.u32 %v1392, 16
      %v1416 = vrot.slane %v1414, 7
      %v1417 = vshll.u32 %v1392, 16
      %v1419 = vor.u32 %v1416, %v1417
      %v1420 = vsel %vm1404, %v1412, %v1419
      %v1421 = vrot.slane %v1416, 4
      %v1423 = vshrl.u32 %v1393, 16
      %v1425 = vrot.slane %v1423, 7
      %v1426 = vshll.u32 %v1393, 16
      %v1428 = vor.u32 %v1425, %v1426
      %v1429 = vrot.slane %v1425, 4
      %v1431 = vshrl.u32 %v1394, 16
      %v1433 = vrot.slane %v1431, 7
      %v1434 = vshll.u32 %v1394, 16
      %v1436 = vor.u32 %v1433, %v1434
      %v1437 = vsel %vm1404, %v1429, %v1436
      %v1438 = vrot.slane %v1433, 4
      %v1440 = vshrl.u32 %v1395, 16
      %v1442 = vrot.slane %v1440, 7
      %v1443 = vshll.u32 %v1395, 16
      %v1445 = vor.u32 %v1442, %v1443
      %v1446 = vrot.slane %v1442, 4
      %v1448 = vshrl.u32 %v1396, 16
      %v1450 = vrot.slane %v1448, 7
      %v1451 = vshll.u32 %v1396, 16
      %v1453 = vor.u32 %v1450, %v1451
      %v1454 = vsel %vm1404, %v1446, %v1453
      %v1455 = vrot.slane %v1450, 4
      %v1457 = vshrl.u32 %v1397, 16
      %v1459 = vrot.slane %v1457, 7
      %v1460 = vshll.u32 %v1397, 16
      %v1462 = vor.u32 %v1459, %v1460
      %v1463 = vrot.slane %v1459, 4
      %v1465 = vshrl.u32 %v1398, 16
      %v1467 = vrot.slane %v1465, 7
      %v1468 = vshll.u32 %v1398, 16
      %v1470 = vor.u32 %v1467, %v1468
      %v1471 = vsel %vm1404, %v1463, %v1470
      %v1472 = vrot.slane %v1467, 4
      %v1474 = vshrl.u32 %v1399, 16
      %v1476 = vrot.slane %v1474, 7
      %v1477 = vshll.u32 %v1399, 16
      %v1479 = vor.u32 %v1476, %v1477
      %v1480 = vrot.slane %v1476, 4
      %v1482 = vshrl.u32 %v1400, 16
      %v1484 = vrot.slane %v1482, 7
      %v1485 = vshll.u32 %v1400, 16
      %v1487 = vor.u32 %v1484, %v1485
      %v1488 = vsel %vm1404, %v1480, %v1487
      %v1489 = vrot.slane %v1484, 4
      %v1491 = vshrl.u32 %v1401, 16
      %v1493 = vrot.slane %v1491, 7
      %v1494 = vshll.u32 %v1401, 16
      %v1496 = vor.u32 %v1493, %v1494
      %v1497 = vrot.slane %v1493, 4
      %v1499 = vshrl.u32 %v1402, 16
      %v1501 = vrot.slane %v1499, 7
      %v1502 = vshll.u32 %v1402, 16
      %v1504 = vor.u32 %v1501, %v1502
      %v1505 = vsel %vm1404, %v1497, %v1504
      %v1506 = vrot.slane %v1501, 4
      %vm1525 = vcmask 27648
      %vm1526 = vmand %vm1525, %vm1371
      %v1527 = vld [vmem:[#allocation3] sm:$0xf]
      %v1528 = vsel %vm1526, %v1411, %v1527
      %1529 = vst [vmem:[#allocation3] sm:$0xf] %v1528
      %1530 = vst.msk [vmem:[#allocation3 + $0x4] sm:$0xf] %vm337, %v1420
      %v1531 = vld [vmem:[#allocation3 + $0x8] sm:$0x1]
      %v1532 = vsel %vm1352, %v1421, %v1531
      %1533 = vst [vmem:[#allocation3 + $0x8] sm:$0x1] %v1532
      %v1534 = vld [vmem:[#allocation3 + $0xc] sm:$0xf]
      %v1535 = vsel %vm1526, %v1428, %v1534
      %1536 = vst [vmem:[#allocation3 + $0xc] sm:$0xf] %v1535
      %1537 = vst.msk [vmem:[#allocation3 + $0x10] sm:$0xf] %vm337, %v1437
      %v1538 = vld [vmem:[#allocation3 + $0x14] sm:$0x1]
      %v1539 = vsel %vm1352, %v1438, %v1538
      %1540 = vst [vmem:[#allocation3 + $0x14] sm:$0x1] %v1539
      %v1541 = vld [vmem:[#allocation3 + $0x18] sm:$0xf]
      %v1542 = vsel %vm1526, %v1445, %v1541
      %1543 = vst [vmem:[#allocation3 + $0x18] sm:$0xf] %v1542
      %1544 = vst.msk [vmem:[#allocation3 + $0x1c] sm:$0xf] %vm337, %v1454
      %v1545 = vld [vmem:[#allocation3 + $0x20] sm:$0x1]
      %v1546 = vsel %vm1352, %v1455, %v1545
      %1547 = vst [vmem:[#allocation3 + $0x20] sm:$0x1] %v1546
      %v1548 = vld [vmem:[#allocation3 + $0x24] sm:$0xf]
      %v1549 = vsel %vm1526, %v1462, %v1548
      %1550 = vst [vmem:[#allocation3 + $0x24] sm:$0xf] %v1549
      %1551 = vst.msk [vmem:[#allocation3 + $0x28] sm:$0xf] %vm337, %v1471
      %v1552 = vld [vmem:[#allocation3 + $0x2c] sm:$0x1]
      %v1553 = vsel %vm1352, %v1472, %v1552
      %1554 = vst [vmem:[#allocation3 + $0x2c] sm:$0x1] %v1553
      %v1555 = vld [vmem:[#allocation3 + $0x30] sm:$0xf]
      %v1556 = vsel %vm1526, %v1479, %v1555
      %1557 = vst [vmem:[#allocation3 + $0x30] sm:$0xf] %v1556
      %1558 = vst.msk [vmem:[#allocation3 + $0x34] sm:$0xf] %vm337, %v1488
      %v1559 = vld [vmem:[#allocation3 + $0x38] sm:$0x1]
      %v1560 = vsel %vm1352, %v1489, %v1559
      %1561 = vst [vmem:[#allocation3 + $0x38] sm:$0x1] %v1560
      %v1562 = vld [vmem:[#allocation3 + $0x3c] sm:$0xf]
      %v1563 = vsel %vm1526, %v1496, %v1562
      %1564 = vst [vmem:[#allocation3 + $0x3c] sm:$0xf] %v1563
      %1565 = vst.msk [vmem:[#allocation3 + $0x40] sm:$0xf] %vm337, %v1505
      %v1566 = vld [vmem:[#allocation3 + $0x44] sm:$0x1]
      %v1567 = vsel %vm1352, %v1506, %v1566
      %1568 = vst [vmem:[#allocation3 + $0x44] sm:$0x1] %v1567
      %v1569 = vld [vmem:[%s308] sm:$0xf]
      %v1570 = vld [vmem:[%s308 + $0x4] sm:$0xf]
      %v1571 = vld [vmem:[%s308 + $0x8] sm:$0x1]
      %v1572 = vld [vmem:[%s308 + $0xc] sm:$0xf]
      %v1573 = vld [vmem:[%s308 + $0x10] sm:$0xf]
      %v1574 = vld [vmem:[%s308 + $0x14] sm:$0x1]
      %v1575 = vld [vmem:[%s308 + $0x18] sm:$0xf]
      %v1576 = vld [vmem:[%s308 + $0x1c] sm:$0xf]
      %v1577 = vld [vmem:[%s308 + $0x20] sm:$0x1]
      %v1578 = vld [vmem:[%s308 + $0x24] sm:$0xf]
      %v1579 = vld [vmem:[%s308 + $0x28] sm:$0xf]
      %v1580 = vld [vmem:[%s308 + $0x2c] sm:$0x1]
      %v1581 = vunpack.c.l.bf16 %v1569
      %v1582 = vunpack.c.l.bf16 %v1570
      %v1583 = vunpack.c.l.bf16 %v1571
      %v1584 = vunpack.c.l.bf16 %v1572
      %v1585 = vunpack.c.l.bf16 %v1573
      %v1586 = vunpack.c.l.bf16 %v1574
      %v1587 = vunpack.c.l.bf16 %v1575
      %v1588 = vunpack.c.l.bf16 %v1576
      %v1589 = vunpack.c.l.bf16 %v1577
      %v1590 = vunpack.c.l.bf16 %v1578
      %v1591 = vunpack.c.l.bf16 %v1579
      %v1592 = vunpack.c.l.bf16 %v1580
      %vm1605 = vcmask 1046528
      %v1606 = vrot.slane %v1581, 1
      %v1607 = vrot.slane %v1582, 1
      %v1608 = vsel %vm1605, %v1606, %v1607
      %v1609 = vrot.slane %v1583, 1
      %v1610 = vsel %vm1605, %v1607, %v1609
      %v1611 = vrot.slane %v1584, 1
      %v1612 = vrot.slane %v1585, 1
      %v1613 = vsel %vm1605, %v1611, %v1612
      %v1614 = vrot.slane %v1586, 1
      %v1615 = vsel %vm1605, %v1612, %v1614
      %v1616 = vrot.slane %v1587, 1
      %v1617 = vrot.slane %v1588, 1
      %v1618 = vsel %vm1605, %v1616, %v1617
      %v1619 = vrot.slane %v1589, 1
      %v1620 = vsel %vm1605, %v1617, %v1619
      %v1621 = vrot.slane %v1590, 1
      %v1622 = vrot.slane %v1591, 1
      %v1623 = vsel %vm1605, %v1621, %v1622
      %v1624 = vrot.slane %v1592, 1
      %v1625 = vsel %vm1605, %v1622, %v1624
      %v1634 = vld [vmem:[#allocation3] sm:$0xf]
      %v1635 = vld [vmem:[#allocation3 + $0x4] sm:$0xf]
      %v1636 = vld [vmem:[#allocation3 + $0xc] sm:$0xf]
      %v1637 = vld [vmem:[#allocation3 + $0x10] sm:$0xf]
      %v1638 = vld [vmem:[#allocation3 + $0x18] sm:$0xf]
      %v1639 = vld [vmem:[#allocation3 + $0x1c] sm:$0xf]
      %v1640 = vld [vmem:[#allocation3 + $0x24] sm:$0xf]
      %v1641 = vld [vmem:[#allocation3 + $0x28] sm:$0xf]
      %v1642 = vld [vmem:[#allocation3 + $0x8] sm:$0x1]
      %v1643 = vld [vmem:[#allocation3 + $0x14] sm:$0x1]
      %v1644 = vld [vmem:[#allocation3 + $0x20] sm:$0x1]
      %v1645 = vld [vmem:[#allocation3 + $0x2c] sm:$0x1]
      %v1646 = vld [vmem:[#allocation3] sm:$0xe]
      %v1647 = vld [vmem:[#allocation3 + $0xc] sm:$0xe]
      %v1648 = vld [vmem:[#allocation3 + $0x18] sm:$0xe]
      %v1649 = vld [vmem:[#allocation3 + $0x24] sm:$0xe]
      %v1658 = vunpack.c.l.b16 %v1634
      %v1659 = vunpack.c.l.b16 %v1635
      %v1660 = vunpack.c.l.b16 %v1636
      %v1661 = vunpack.c.l.b16 %v1637
      %v1662 = vunpack.c.l.b16 %v1638
      %v1663 = vunpack.c.l.b16 %v1639
      %v1664 = vunpack.c.l.b16 %v1640
      %v1665 = vunpack.c.l.b16 %v1641
      %v1666 = vpack.c.b16 %v1659, %v1658
      %v1667 = vpack.c.b16 %v1661, %v1660
      %v1668 = vpack.c.b16 %v1663, %v1662
      %v1669 = vpack.c.b16 %v1665, %v1664
      %v1674 = vunpack.c.l.b16 %v1642
      %v1675 = vunpack.c.l.b16 %v1643
      %v1676 = vunpack.c.l.b16 %v1644
      %v1677 = vunpack.c.l.b16 %v1645
      %v1678 = vpack.c.b16 %v1674, %v1674
      %v1679 = vpack.c.b16 %v1675, %v1675
      %v1680 = vpack.c.b16 %v1676, %v1676
      %v1681 = vpack.c.b16 %v1677, %v1677
      %v1683 = vshrl.u32 %v1666, 16
      %v1685 = vshll.u32 %v1666, 16
      %v1687 = vrot.slane %v1685, 1
      %v1688 = vor.u32 %v1683, %v1687
      %v1690 = vshll.u32 %v1678, 16
      %v1692 = vrot.slane %v1690, 1
      %v1693 = vsel %vm456, %v1688, %v1692
      %v1695 = vshrl.u32 %v1667, 16
      %v1697 = vshll.u32 %v1667, 16
      %v1699 = vrot.slane %v1697, 1
      %v1700 = vor.u32 %v1695, %v1699
      %v1702 = vshll.u32 %v1679, 16
      %v1704 = vrot.slane %v1702, 1
      %v1705 = vsel %vm456, %v1700, %v1704
      %v1707 = vshrl.u32 %v1668, 16
      %v1709 = vshll.u32 %v1668, 16
      %v1711 = vrot.slane %v1709, 1
      %v1712 = vor.u32 %v1707, %v1711
      %v1714 = vshll.u32 %v1680, 16
      %v1716 = vrot.slane %v1714, 1
      %v1717 = vsel %vm456, %v1712, %v1716
      %v1719 = vshrl.u32 %v1669, 16
      %v1721 = vshll.u32 %v1669, 16
      %v1723 = vrot.slane %v1721, 1
      %v1724 = vor.u32 %v1719, %v1723
      %v1726 = vshll.u32 %v1681, 16
      %v1728 = vrot.slane %v1726, 1
      %v1729 = vsel %vm456, %v1724, %v1728
      %1730 = vrot.lane.b32.xlu0 %v1693, 4
      %v1731 = vpop.permute.xlu0 %1730
      %1732 = vrot.lane.b32.xlu0 %v1705, 4
      %v1733 = vpop.permute.xlu0 %1732
      %1734 = vrot.lane.b32.xlu0 %v1717, 4
      %v1735 = vpop.permute.xlu0 %1734
      %1736 = vrot.lane.b32.xlu0 %v1729, 4
      %v1737 = vpop.permute.xlu0 %1736
      %v1742 = vunpack.c.l.b16 %v1646
      %v1743 = vunpack.c.l.b16 %v1647
      %v1744 = vunpack.c.l.b16 %v1648
      %v1745 = vunpack.c.l.b16 %v1649
      %v1746 = vpack.c.b16 %v1659, %v1742
      %v1747 = vpack.c.b16 %v1661, %v1743
      %v1748 = vpack.c.b16 %v1663, %v1744
      %v1749 = vpack.c.b16 %v1665, %v1745
      %v1750 = vrot.slane %v1746, 1
      %v1751 = vrot.slane %v1678, 1
      %v1752 = vsel %vm559, %v1750, %v1751
      %v1753 = vrot.slane %v1747, 1
      %v1754 = vrot.slane %v1679, 1
      %v1755 = vsel %vm559, %v1753, %v1754
      %v1756 = vrot.slane %v1748, 1
      %v1757 = vrot.slane %v1680, 1
      %v1758 = vsel %vm559, %v1756, %v1757
      %v1759 = vrot.slane %v1749, 1
      %v1760 = vrot.slane %v1681, 1
      %v1761 = vsel %vm559, %v1759, %v1760
      %1762 = vrot.lane.b32.xlu0 %v1752, 8
      %v1763 = vpop.permute.xlu0 %1762
      %1764 = vrot.lane.b32.xlu0 %v1755, 8
      %v1765 = vpop.permute.xlu0 %1764
      %1766 = vrot.lane.b32.xlu0 %v1758, 8
      %v1767 = vpop.permute.xlu0 %1766
      %1768 = vrot.lane.b32.xlu0 %v1761, 8
      %v1769 = vpop.permute.xlu0 %1768
      %v1771 = vsel %vm590, %v1666, %v1731
      %v1773 = vsel %vm590, %v1667, %v1733
      %v1775 = vsel %vm590, %v1668, %v1735
      %v1777 = vsel %vm590, %v1669, %v1737
      %v1779 = vsel %vm603, %v1771, %v1763
      %v1781 = vsel %vm603, %v1773, %v1765
      %v1783 = vsel %vm603, %v1775, %v1767
      %v1785 = vsel %vm603, %v1777, %v1769
      %v1786 = vld [vmem:[%s4] sm:$0xf]
      %v1787 = vld [vmem:[%s4 + $0x4] sm:$0x3]
      %s1788 = scalar_lea.vmem [#allocation3], 12
      %v1789 = vld [vmem:[%s1788] sm:$0xf]
      %v1790 = vld [vmem:[%s1788 + $0x4] sm:$0xf]
      %v1791 = vld [vmem:[%s1788 + $0xc] sm:$0xf]
      %v1792 = vld [vmem:[%s1788 + $0x10] sm:$0xf]
      %v1793 = vld [vmem:[%s1788 + $0x18] sm:$0xf]
      %v1794 = vld [vmem:[%s1788 + $0x1c] sm:$0xf]
      %v1795 = vld [vmem:[%s1788 + $0x24] sm:$0xf]
      %v1796 = vld [vmem:[%s1788 + $0x28] sm:$0xf]
      %v1797 = vld [vmem:[%s1788 + $0x8] sm:$0x1]
      %v1798 = vld [vmem:[%s1788 + $0x14] sm:$0x1]
      %v1799 = vld [vmem:[%s1788 + $0x20] sm:$0x1]
      %v1800 = vld [vmem:[%s1788 + $0x2c] sm:$0x1]
      %v1801 = vld [vmem:[%s1788] sm:$0xe]
      %v1802 = vld [vmem:[%s1788 + $0xc] sm:$0xe]
      %v1803 = vld [vmem:[%s1788 + $0x18] sm:$0xe]
      %v1804 = vld [vmem:[%s1788 + $0x24] sm:$0xe]
      %v1813 = vunpack.c.l.b16 %v1789
      %v1814 = vunpack.c.l.b16 %v1790
      %v1815 = vunpack.c.l.b16 %v1791
      %v1816 = vunpack.c.l.b16 %v1792
      %v1817 = vunpack.c.l.b16 %v1793
      %v1818 = vunpack.c.l.b16 %v1794
      %v1819 = vunpack.c.l.b16 %v1795
      %v1820 = vunpack.c.l.b16 %v1796
      %v1821 = vpack.c.b16 %v1814, %v1813
      %v1822 = vpack.c.b16 %v1816, %v1815
      %v1823 = vpack.c.b16 %v1818, %v1817
      %v1824 = vpack.c.b16 %v1820, %v1819
      %v1829 = vunpack.c.l.b16 %v1797
      %v1830 = vunpack.c.l.b16 %v1798
      %v1831 = vunpack.c.l.b16 %v1799
      %v1832 = vunpack.c.l.b16 %v1800
      %v1833 = vpack.c.b16 %v1829, %v1829
      %v1834 = vpack.c.b16 %v1830, %v1830
      %v1835 = vpack.c.b16 %v1831, %v1831
      %v1836 = vpack.c.b16 %v1832, %v1832
      %v1838 = vshrl.u32 %v1821, 16
      %v1840 = vshll.u32 %v1821, 16
      %v1842 = vrot.slane %v1840, 1
      %v1843 = vor.u32 %v1838, %v1842
      %v1845 = vshll.u32 %v1833, 16
      %v1847 = vrot.slane %v1845, 1
      %v1848 = vsel %vm456, %v1843, %v1847
      %v1850 = vshrl.u32 %v1822, 16
      %v1852 = vshll.u32 %v1822, 16
      %v1854 = vrot.slane %v1852, 1
      %v1855 = vor.u32 %v1850, %v1854
      %v1857 = vshll.u32 %v1834, 16
      %v1859 = vrot.slane %v1857, 1
      %v1860 = vsel %vm456, %v1855, %v1859
      %v1862 = vshrl.u32 %v1823, 16
      %v1864 = vshll.u32 %v1823, 16
      %v1866 = vrot.slane %v1864, 1
      %v1867 = vor.u32 %v1862, %v1866
      %v1869 = vshll.u32 %v1835, 16
      %v1871 = vrot.slane %v1869, 1
      %v1872 = vsel %vm456, %v1867, %v1871
      %v1874 = vshrl.u32 %v1824, 16
      %v1876 = vshll.u32 %v1824, 16
      %v1878 = vrot.slane %v1876, 1
      %v1879 = vor.u32 %v1874, %v1878
      %v1881 = vshll.u32 %v1836, 16
      %v1883 = vrot.slane %v1881, 1
      %v1884 = vsel %vm456, %v1879, %v1883
      %1885 = vrot.lane.b32.xlu0 %v1848, 4
      %v1886 = vpop.permute.xlu0 %1885
      %1887 = vrot.lane.b32.xlu0 %v1860, 4
      %v1888 = vpop.permute.xlu0 %1887
      %1889 = vrot.lane.b32.xlu0 %v1872, 4
      %v1890 = vpop.permute.xlu0 %1889
      %1891 = vrot.lane.b32.xlu0 %v1884, 4
      %v1892 = vpop.permute.xlu0 %1891
      %v1897 = vunpack.c.l.b16 %v1801
      %v1898 = vunpack.c.l.b16 %v1802
      %v1899 = vunpack.c.l.b16 %v1803
      %v1900 = vunpack.c.l.b16 %v1804
      %v1901 = vpack.c.b16 %v1814, %v1897
      %v1902 = vpack.c.b16 %v1816, %v1898
      %v1903 = vpack.c.b16 %v1818, %v1899
      %v1904 = vpack.c.b16 %v1820, %v1900
      %v1905 = vrot.slane %v1901, 1
      %v1906 = vrot.slane %v1833, 1
      %v1907 = vsel %vm559, %v1905, %v1906
      %v1908 = vrot.slane %v1902, 1
      %v1909 = vrot.slane %v1834, 1
      %v1910 = vsel %vm559, %v1908, %v1909
      %v1911 = vrot.slane %v1903, 1
      %v1912 = vrot.slane %v1835, 1
      %v1913 = vsel %vm559, %v1911, %v1912
      %v1914 = vrot.slane %v1904, 1
      %v1915 = vrot.slane %v1836, 1
      %v1916 = vsel %vm559, %v1914, %v1915
      %1917 = vrot.lane.b32.xlu0 %v1907, 8
      %v1918 = vpop.permute.xlu0 %1917
      %1919 = vrot.lane.b32.xlu0 %v1910, 8
      %v1920 = vpop.permute.xlu0 %1919
      %1921 = vrot.lane.b32.xlu0 %v1913, 8
      %v1922 = vpop.permute.xlu0 %1921
      %1923 = vrot.lane.b32.xlu0 %v1916, 8
      %v1924 = vpop.permute.xlu0 %1923
      %v1926 = vsel %vm590, %v1821, %v1886
      %v1928 = vsel %vm590, %v1822, %v1888
      %v1930 = vsel %vm590, %v1823, %v1890
      %v1932 = vsel %vm590, %v1824, %v1892
      %v1934 = vsel %vm603, %v1926, %v1918
      %v1936 = vsel %vm603, %v1928, %v1920
      %v1938 = vsel %vm603, %v1930, %v1922
      %v1940 = vsel %vm603, %v1932, %v1924
      %s1941 = scalar_lea.vmem %s4, 8
      %v1942 = vld [vmem:[%s1941] sm:$0xf]
      %v1943 = vld [vmem:[%s1941 + $0x4] sm:$0x3]
      %v1946 = vunpack.c.l.b16 %v1942
      %v1947 = vunpack.c.l.b16 %v1943
      %v1948 = vpack.c.b16 %v1947, %v1946
      %v1949 = vsel %vm855, %v1934, 0
      %v1951 = vsel %vm855, %v1936, 0
      %v1953 = vsel %vm855, %v1938, 0
      %v1955 = vsel %vm855, %v1940, 0
      %v1958 = vsel %vm868, %v1948, 0
      %1960 = vmatpush.bf16.msra.mxu0 0
      %1961 = vmatpush.bf16.msra.mxu0 0
      %1962 = vmatpush.bf16.msra.mxu0 0
      %1963 = vmatpush.bf16.msra.mxu0 0
      %1964 = vmatpush.bf16.msra.mxu0 0
      %1965 = vmatpush.bf16.msra.mxu0 0
      %1966 = vmatpush.bf16.msra.mxu0 0
      %1967 = vmatpush.bf16.msra.mxu0 %v1958
      %1968 = vmatmul.bf16.gmra.mxu0 %v1949
      %v1969 = vpop.f32.mrf.mxu0
      %v1970 = vadd.f32 0.0, %v1969
      %v1971 = vpop.f32.mrf.mxu0
      %v1972 = vadd.f32 0.0, %v1971
      %1973 = vmatmul.bf16.gmra.mxu0 %v1951
      %v1974 = vpop.f32.mrf.mxu0
      %v1975 = vadd.f32 0.0, %v1974
      %v1976 = vpop.f32.mrf.mxu0
      %v1977 = vadd.f32 0.0, %v1976
      %1978 = vmatmul.bf16.gmra.mxu0 %v1953
      %v1979 = vpop.f32.mrf.mxu0
      %v1980 = vadd.f32 0.0, %v1979
      %v1981 = vpop.f32.mrf.mxu0
      %v1982 = vadd.f32 0.0, %v1981
      %1983 = vmatmul.bf16.gmra.mxu0 %v1955
      %v1984 = vpop.f32.mrf.mxu0
      %v1985 = vadd.f32 0.0, %v1984
      %v1986 = vpop.f32.mrf.mxu0
      %v1987 = vadd.f32 0.0, %v1986
      %1988 = vdwg.mxu0
      %v1991 = vunpack.c.l.b16 %v1786
      %v1992 = vunpack.c.l.b16 %v1787
      %v1993 = vpack.c.b16 %v1992, %v1991
      %v1994 = vsel %vm855, %v1779, 0
      %v1996 = vsel %vm855, %v1781, 0
      %v1998 = vsel %vm855, %v1783, 0
      %v2000 = vsel %vm855, %v1785, 0
      %v2003 = vsel %vm868, %v1993, 0
      %2005 = vmatpush.bf16.msra.mxu0 0
      %2006 = vmatpush.bf16.msra.mxu0 0
      %2007 = vmatpush.bf16.msra.mxu0 0
      %2008 = vmatpush.bf16.msra.mxu0 0
      %2009 = vmatpush.bf16.msra.mxu0 0
      %2010 = vmatpush.bf16.msra.mxu0 0
      %2011 = vmatpush.bf16.msra.mxu0 0
      %2012 = vmatpush.bf16.msra.mxu0 %v2003
      %2013 = vmatmul.bf16.gmra.mxu0 %v1994
      %v2014 = vpop.f32.mrf.mxu0
      %v2015 = vadd.f32 %v1970, %v2014
      %v2016 = vpop.f32.mrf.mxu0
      %v2017 = vadd.f32 %v1972, %v2016
      %2018 = vmatmul.bf16.gmra.mxu0 %v1996
      %v2019 = vpop.f32.mrf.mxu0
      %v2020 = vadd.f32 %v1975, %v2019
      %v2021 = vpop.f32.mrf.mxu0
      %v2022 = vadd.f32 %v1977, %v2021
      %2023 = vmatmul.bf16.gmra.mxu0 %v1998
      %v2024 = vpop.f32.mrf.mxu0
      %v2025 = vadd.f32 %v1980, %v2024
      %v2026 = vpop.f32.mrf.mxu0
      %v2027 = vadd.f32 %v1982, %v2026
      %2028 = vmatmul.bf16.gmra.mxu0 %v2000
      %v2029 = vpop.f32.mrf.mxu0
      %v2030 = vadd.f32 %v1985, %v2029
      %v2031 = vpop.f32.mrf.mxu0
      %v2032 = vadd.f32 %v1987, %v2031
      %2033 = vdwg.mxu0
      %s2034 = scalar_lea.vmem [#allocation3], 24
      %v2035 = vld [vmem:[%s2034] sm:$0xf]
      %v2036 = vld [vmem:[%s2034 + $0x4] sm:$0xf]
      %v2037 = vld [vmem:[%s2034 + $0xc] sm:$0xf]
      %v2038 = vld [vmem:[%s2034 + $0x10] sm:$0xf]
      %v2039 = vld [vmem:[%s2034 + $0x18] sm:$0xf]
      %v2040 = vld [vmem:[%s2034 + $0x1c] sm:$0xf]
      %v2041 = vld [vmem:[%s2034 + $0x24] sm:$0xf]
      %v2042 = vld [vmem:[%s2034 + $0x28] sm:$0xf]
      %v2043 = vld [vmem:[%s2034 + $0x8] sm:$0x1]
      %v2044 = vld [vmem:[%s2034 + $0x14] sm:$0x1]
      %v2045 = vld [vmem:[%s2034 + $0x20] sm:$0x1]
      %v2046 = vld [vmem:[%s2034 + $0x2c] sm:$0x1]
      %v2047 = vld [vmem:[%s2034] sm:$0xe]
      %v2048 = vld [vmem:[%s2034 + $0xc] sm:$0xe]
      %v2049 = vld [vmem:[%s2034 + $0x18] sm:$0xe]
      %v2050 = vld [vmem:[%s2034 + $0x24] sm:$0xe]
      %v2059 = vunpack.c.l.b16 %v2035
      %v2060 = vunpack.c.l.b16 %v2036
      %v2061 = vunpack.c.l.b16 %v2037
      %v2062 = vunpack.c.l.b16 %v2038
      %v2063 = vunpack.c.l.b16 %v2039
      %v2064 = vunpack.c.l.b16 %v2040
      %v2065 = vunpack.c.l.b16 %v2041
      %v2066 = vunpack.c.l.b16 %v2042
      %v2067 = vpack.c.b16 %v2060, %v2059
      %v2068 = vpack.c.b16 %v2062, %v2061
      %v2069 = vpack.c.b16 %v2064, %v2063
      %v2070 = vpack.c.b16 %v2066, %v2065
      %v2075 = vunpack.c.l.b16 %v2043
      %v2076 = vunpack.c.l.b16 %v2044
      %v2077 = vunpack.c.l.b16 %v2045
      %v2078 = vunpack.c.l.b16 %v2046
      %v2079 = vpack.c.b16 %v2075, %v2075
      %v2080 = vpack.c.b16 %v2076, %v2076
      %v2081 = vpack.c.b16 %v2077, %v2077
      %v2082 = vpack.c.b16 %v2078, %v2078
      %v2084 = vshrl.u32 %v2067, 16
      %v2086 = vshll.u32 %v2067, 16
      %v2088 = vrot.slane %v2086, 1
      %v2089 = vor.u32 %v2084, %v2088
      %v2091 = vshll.u32 %v2079, 16
      %v2093 = vrot.slane %v2091, 1
      %v2094 = vsel %vm456, %v2089, %v2093
      %v2096 = vshrl.u32 %v2068, 16
      %v2098 = vshll.u32 %v2068, 16
      %v2100 = vrot.slane %v2098, 1
      %v2101 = vor.u32 %v2096, %v2100
      %v2103 = vshll.u32 %v2080, 16
      %v2105 = vrot.slane %v2103, 1
      %v2106 = vsel %vm456, %v2101, %v2105
      %v2108 = vshrl.u32 %v2069, 16
      %v2110 = vshll.u32 %v2069, 16
      %v2112 = vrot.slane %v2110, 1
      %v2113 = vor.u32 %v2108, %v2112
      %v2115 = vshll.u32 %v2081, 16
      %v2117 = vrot.slane %v2115, 1
      %v2118 = vsel %vm456, %v2113, %v2117
      %v2120 = vshrl.u32 %v2070, 16
      %v2122 = vshll.u32 %v2070, 16
      %v2124 = vrot.slane %v2122, 1
      %v2125 = vor.u32 %v2120, %v2124
      %v2127 = vshll.u32 %v2082, 16
      %v2129 = vrot.slane %v2127, 1
      %v2130 = vsel %vm456, %v2125, %v2129
      %2131 = vrot.lane.b32.xlu0 %v2094, 4
      %v2132 = vpop.permute.xlu0 %2131
      %2133 = vrot.lane.b32.xlu0 %v2106, 4
      %v2134 = vpop.permute.xlu0 %2133
      %2135 = vrot.lane.b32.xlu0 %v2118, 4
      %v2136 = vpop.permute.xlu0 %2135
      %2137 = vrot.lane.b32.xlu0 %v2130, 4
      %v2138 = vpop.permute.xlu0 %2137
      %v2143 = vunpack.c.l.b16 %v2047
      %v2144 = vunpack.c.l.b16 %v2048
      %v2145 = vunpack.c.l.b16 %v2049
      %v2146 = vunpack.c.l.b16 %v2050
      %v2147 = vpack.c.b16 %v2060, %v2143
      %v2148 = vpack.c.b16 %v2062, %v2144
      %v2149 = vpack.c.b16 %v2064, %v2145
      %v2150 = vpack.c.b16 %v2066, %v2146
      %v2151 = vrot.slane %v2147, 1
      %v2152 = vrot.slane %v2079, 1
      %v2153 = vsel %vm559, %v2151, %v2152
      %v2154 = vrot.slane %v2148, 1
      %v2155 = vrot.slane %v2080, 1
      %v2156 = vsel %vm559, %v2154, %v2155
      %v2157 = vrot.slane %v2149, 1
      %v2158 = vrot.slane %v2081, 1
      %v2159 = vsel %vm559, %v2157, %v2158
      %v2160 = vrot.slane %v2150, 1
      %v2161 = vrot.slane %v2082, 1
      %v2162 = vsel %vm559, %v2160, %v2161
      %2163 = vrot.lane.b32.xlu0 %v2153, 8
      %v2164 = vpop.permute.xlu0 %2163
      %2165 = vrot.lane.b32.xlu0 %v2156, 8
      %v2166 = vpop.permute.xlu0 %2165
      %2167 = vrot.lane.b32.xlu0 %v2159, 8
      %v2168 = vpop.permute.xlu0 %2167
      %2169 = vrot.lane.b32.xlu0 %v2162, 8
      %v2170 = vpop.permute.xlu0 %2169
      %v2172 = vsel %vm590, %v2067, %v2132
      %v2174 = vsel %vm590, %v2068, %v2134
      %v2176 = vsel %vm590, %v2069, %v2136
      %v2178 = vsel %vm590, %v2070, %v2138
      %v2180 = vsel %vm603, %v2172, %v2164
      %v2182 = vsel %vm603, %v2174, %v2166
      %v2184 = vsel %vm603, %v2176, %v2168
      %v2186 = vsel %vm603, %v2178, %v2170
      %s2187 = scalar_lea.vmem %s4, 16
      %v2188 = vld [vmem:[%s2187] sm:$0xf]
      %v2189 = vld [vmem:[%s2187 + $0x4] sm:$0x3]
      %v2192 = vunpack.c.l.b16 %v2188
      %v2193 = vunpack.c.l.b16 %v2189
      %v2194 = vpack.c.b16 %v2193, %v2192
      %v2195 = vsel %vm855, %v2180, 0
      %v2197 = vsel %vm855, %v2182, 0
      %v2199 = vsel %vm855, %v2184, 0
      %v2201 = vsel %vm855, %v2186, 0
      %v2204 = vsel %vm868, %v2194, 0
      %2206 = vmatpush.bf16.msra.mxu0 0
      %2207 = vmatpush.bf16.msra.mxu0 0
      %2208 = vmatpush.bf16.msra.mxu0 0
      %2209 = vmatpush.bf16.msra.mxu0 0
      %2210 = vmatpush.bf16.msra.mxu0 0
      %2211 = vmatpush.bf16.msra.mxu0 0
      %2212 = vmatpush.bf16.msra.mxu0 0
      %2213 = vmatpush.bf16.msra.mxu0 %v2204
      %2214 = vmatmul.bf16.gmra.mxu0 %v2195
      %v2215 = vpop.f32.mrf.mxu0
      %v2216 = vadd.f32 0.0, %v2215
      %v2217 = vpop.f32.mrf.mxu0
      %v2218 = vadd.f32 0.0, %v2217
      %2219 = vmatmul.bf16.gmra.mxu0 %v2197
      %v2220 = vpop.f32.mrf.mxu0
      %v2221 = vadd.f32 0.0, %v2220
      %v2222 = vpop.f32.mrf.mxu0
      %v2223 = vadd.f32 0.0, %v2222
      %2224 = vmatmul.bf16.gmra.mxu0 %v2199
      %v2225 = vpop.f32.mrf.mxu0
      %v2226 = vadd.f32 0.0, %v2225
      %v2227 = vpop.f32.mrf.mxu0
      %v2228 = vadd.f32 0.0, %v2227
      %2229 = vmatmul.bf16.gmra.mxu0 %v2201
      %v2230 = vpop.f32.mrf.mxu0
      %v2231 = vadd.f32 0.0, %v2230
      %v2232 = vpop.f32.mrf.mxu0
      %v2233 = vadd.f32 0.0, %v2232
      %2234 = vdwg.mxu0
      %v2235 = vadd.f32 %v2015, %v2216
      %v2236 = vadd.f32 %v2017, %v2218
      %v2237 = vadd.f32 %v2020, %v2221
      %v2238 = vadd.f32 %v2022, %v2223
      %v2239 = vadd.f32 %v2025, %v2226
      %v2240 = vadd.f32 %v2027, %v2228
      %v2241 = vadd.f32 %v2030, %v2231
      %v2242 = vadd.f32 %v2032, %v2233
      %v2243 = vld [vmem:[%s5] sm:$0x1]
      %v2245 = vperm.slane %v2243, 0
      %v2247 = vadd.f32 %v2235, %v2245
      %v2248 = vadd.f32 %v2236, %v2245
      %v2249 = vadd.f32 %v2237, %v2245
      %v2250 = vadd.f32 %v2238, %v2245
      %v2251 = vadd.f32 %v2239, %v2245
      %v2252 = vadd.f32 %v2240, %v2245
      %v2253 = vadd.f32 %v2241, %v2245
      %v2254 = vadd.f32 %v2242, %v2245
      %v2255 = vadd.f32 %v2247, %v1608
      %v2256 = vadd.f32 %v2248, %v1610
      %v2257 = vadd.f32 %v2249, %v1613
      %v2258 = vadd.f32 %v2250, %v1615
      %v2259 = vadd.f32 %v2251, %v1618
      %v2260 = vadd.f32 %v2252, %v1620
      %v2261 = vadd.f32 %v2253, %v1623
      %v2262 = vadd.f32 %v2254, %v1625
      %v2263 = vmax.f32 %v2255, 0.0
      %v2264 = vmax.f32 %v2256, 0.0
      %v2265 = vmax.f32 %v2257, 0.0
      %v2266 = vmax.f32 %v2258, 0.0
      %v2267 = vmax.f32 %v2259, 0.0
      %v2268 = vmax.f32 %v2260, 0.0
      %v2269 = vmax.f32 %v2261, 0.0
      %v2270 = vmax.f32 %v2262, 0.0
      %v2271 = vpack.c.bf16 %v2263, %v2263
      %v2272 = vpack.c.bf16 %v2264, %v2264
      %v2273 = vpack.c.bf16 %v2265, %v2265
      %v2274 = vpack.c.bf16 %v2266, %v2266
      %v2275 = vpack.c.bf16 %v2267, %v2267
      %v2276 = vpack.c.bf16 %v2268, %v2268
      %v2277 = vpack.c.bf16 %v2269, %v2269
      %v2278 = vpack.c.bf16 %v2270, %v2270
      %2279 = vst.msk [vmem:[%s328] sm:$0xf] %vm337, %v2271
      %2280 = vst.msk [vmem:[%s328 + $0x4] sm:$0xf] %vm337, %v2272
      %2281 = vst.msk [vmem:[%s328 + $0x8] sm:$0xf] %vm337, %v2273
      %2282 = vst.msk [vmem:[%s328 + $0xc] sm:$0xf] %vm337, %v2274
      %2283 = vst.msk [vmem:[%s328 + $0x10] sm:$0xf] %vm337, %v2275
      %2284 = vst.msk [vmem:[%s328 + $0x14] sm:$0xf] %vm337, %v2276
      %2285 = vst.msk [vmem:[%s328 + $0x18] sm:$0xf] %vm337, %v2277
      %2286 = vst.msk [vmem:[%s328 + $0x1c] sm:$0xf] %vm337, %v2278
      %s2287 = smul.u32 4, %s22
      %p2288 = scmp.lt.s32.totalorder %s21, 1
      %s2289 = scalar_select %p2288, %s21, 1
      %p2290 = scmp.lt.s32.totalorder %s2287, 15
      %s2291 = scalar_select %p2290, %s2287, 15
      %s2292 = smul.addr %s2291, 2
      %s2293 = smul.addr %s2289, 32
      %s2294 = sadd.s32 %s2292, %s2293
      %s2295 = smul.addr %s2294, 4
      %s2296 = scalar_lea.vmem %s6, %s2295
      // Predicated region
      $region45: #{tpu_custom_call.1} parent=43 // pred_check
        %p2297 = pneg %p191
      $region46: #{tpu_custom_call.1} parent=43 // pred_check_branch
        %2299 = sbr.rel (%p2297) target = $region48
      $region47: #{tpu_custom_call.1} parent=43 // pred_region
        %s2300 = smul.u32 4, %s22
      $region48: #{tpu_custom_call.1} parent=43 // pred_fallthru
        _
    $region44: #{tpu_custom_call.1} parent=5 // pred_fallthru
      _
    %p2301 = scmp.le.s32.totalorder 2, %s12
    // Predicated region
    $region49: #{tpu_custom_call.1} parent=5 // pred_check
      %p2302 = pneg %p2301
    $region50: #{tpu_custom_call.1} parent=5 // pred_check_branch
      %2304 = sbr.rel (%p2302) target = $region52
    $region51: #{tpu_custom_call.1} parent=5 // pred_region
      %s2305 = ssub.s32 %s12, 2
      // Predicated region
      $region53: #{tpu_custom_call.1} parent=51 // pred_check
        %p2306 = pneg %p197
      $region54: #{tpu_custom_call.1} parent=51 // pred_check_branch
        %2308 = sbr.rel (%p2306) target = $region56
      $region55: #{tpu_custom_call.1} parent=51 // pred_region
        %s2309 = smul.u32 4, %s24
        %p2310 = scmp.lt.s32.totalorder %s23, 1
        %s2311 = scalar_select %p2310, %s23, 1
        %p2312 = scmp.lt.s32.totalorder %s2309, 15
        %s2313 = scalar_select %p2312, %s2309, 15
        %s2314 = smul.addr %s2313, 2
        %s2315 = smul.addr %s2311, 32
        %s2316 = sadd.s32 %s2314, %s2315
        %s2317 = smul.addr %s2316, 4
        %s2318 = scalar_lea.vmem %s6, %s2317
      $region56: #{tpu_custom_call.1} parent=51 // pred_fallthru
        _
    $region52: #{tpu_custom_call.1} parent=5 // pred_fallthru
      _
  $region6: #{tpu_custom_call.1} parent=0 // loop_footer
    %s16 = sadd.s32 1, %s12
  $region7: #{tpu_custom_call.1} parent=0 // loop_footer_branch
    %11 = sbr.rel target = $region3
  $region8: #{tpu_custom_call.1} parent=0 // loop_exit
    _

</llo_original>
